<compile_context>
chip_gen: v5e
topology: v5e:2x2
jax: 0.10.0
libtpu: 0.0.40
codegen_flags: <defaults>
</compile_context>

<pallas_src>
import functools

import jax
import jax.numpy as jnp
from jax import lax
from jax.experimental import pallas as pl
from jax.experimental.pallas import tpu as pltpu


# ----------------------------------------------------------------------------
# Fused kernel: whole inception-SE block for NB batch elements per grid step.
# ----------------------------------------------------------------------------
def _inception_se_kernel(x_ref, mask_ref, w_ref, aux_ref, o_ref,
                         *, height, width, nb, cin, cmid, ch):
    hw = height * width
    lanes = nb * hw          # lane extent handled this step (batch folded in)
    k9 = 9 * cmid            # contraction depth of the 3x3 convs on Cmid ch.
    k27 = 27 * cmid          # contraction depth of conve (3 branches concat)

    x = x_ref[...].astype(jnp.float32)            # (Cin, L)
    masks = mask_ref[...]                         # (9, L) f32 0/1, precomputed
    w_all = w_ref[...]                            # packed weight slab (f32)
    aux = aux_ref[...]                            # packed bias / SE slab (f32)

    # ---- unpack weight slab; MXU operands become bf16 -----------------------
    r = 0
    w1 = w_all[r:r + cmid, 0:cin].astype(jnp.bfloat16)
    r += cmid
    wbr = w_all[r:r + 3 * cmid, 0:k9].astype(jnp.bfloat16)     # conv11/21/31
    r += 3 * cmid
    w12 = w_all[r:r + cmid, 0:k9].astype(jnp.bfloat16)
    r += cmid
    w32 = w_all[r:r + cmid, 0:k9].astype(jnp.bfloat16)
    r += cmid
    w33 = w_all[r:r + cmid, 0:k9].astype(jnp.bfloat16)
    r += cmid
    we = w_all[r:r + 2 * cin, 0:k27].astype(jnp.bfloat16)      # conve

    # ---- unpack aux slab (all f32, VPU only) --------------------------------
    r = 0
    b1 = aux[r:r + cmid, 0:1]
    r += cmid
    bbr = aux[r:r + 3 * cmid, 0:1]
    r += 3 * cmid
    b12 = aux[r:r + cmid, 0:1]
    r += cmid
    b32 = aux[r:r + cmid, 0:1]
    r += cmid
    b33 = aux[r:r + cmid, 0:1]
    r += cmid
    be = aux[r:r + 2 * cin, 0:1]
    r += 2 * cin
    sew1 = aux[r:r + cmid, 0:ch]                  # (Cmid, Ch)
    r += cmid
    sew2t = aux[r:r + cmid, 0:ch]                 # (Cmid, Ch) = se_w2.T

    tap_shifts = tuple(dh * width + dw for dh in (-1, 0, 1) for dw in (-1, 0, 1))

    def tap_stack(t_in):
        """(C, L) f32 -> (9*C, L) bf16 tap matrix (roll + boundary mask per tap)."""
        parts = []
        for t, s in enumerate(tap_shifts):
            if s == 0:
                parts.append(t_in)
            else:
                # rolled[:, p] == t_in[:, (p + s) % L]; wrapped / cross-image
                # lanes are exactly the out-of-image taps, zeroed by the mask.
                parts.append(pltpu.roll(t_in, (-s) % lanes, axis=1)
                             * masks[t:t + 1, :])
        return jnp.concatenate(parts, axis=0).astype(jnp.bfloat16)

    def mm(wt, tap):
        return jnp.dot(wt, tap, preferred_element_type=jnp.float32)

    def relu(v):
        return jnp.maximum(v, 0.0)

    # ---- conv1: 1x1 conv (+ folded BN) + ReLU -------------------------------
    inp = relu(mm(w1, x.astype(jnp.bfloat16)) + b1)            # (Cmid, L)

    # ---- conv11/21/31 fused into ONE matmul (K = 9*Cmid) --------------------
    l123 = relu(mm(wbr, tap_stack(inp)) + bbr)                 # (3*Cmid, L)
    l1 = l123[0:cmid]
    l2 = l123[cmid:2 * cmid]
    l3 = l123[2 * cmid:3 * cmid]

    # ---- second-level branches, one matmul each -----------------------------
    l12 = relu(mm(w12, tap_stack(l1)) + b12)
    l32 = relu(mm(w32, tap_stack(l3)) + b32)
    l33 = relu(mm(w33, tap_stack(l32)) + b33)

    # ---- squeeze-excitation, per image (lane blocks of width HW) ------------
    gates = []
    for b in range(nb):
        blk = inp[:, b * hw:(b + 1) * hw]
        pooled = jnp.sum(blk, axis=1, keepdims=True) * (1.0 / hw)      # (Cmid,1)
        hdn = relu(jnp.sum(sew1 * pooled, axis=0, keepdims=True))      # (1, Ch)
        gates.append(jax.nn.sigmoid(
            jnp.sum(sew2t * hdn, axis=1, keepdims=True)))              # (Cmid,1)
    segate = jnp.concatenate(
        [inp[:, b * hw:(b + 1) * hw] * gates[b] for b in range(nb)], axis=1)

    # ---- gate branches, concat along channels, conve in ONE matmul ----------
    gated = jnp.concatenate([l12 * segate, l2 * segate, l33 * segate], axis=0)
    out = relu(mm(we, tap_stack(gated)) + be)                  # (2*Cin, L)
    o_ref[...] = out.astype(o_ref.dtype)


# ----------------------------------------------------------------------------
# Wrapper: layout plumbing + single pallas_call.
#   num_steps=1 folds the whole batch into the lane axis (best on v5e/v6e);
#   on v7x pass num_steps=2 (with an even batch) so both TensorCores get work.
# ----------------------------------------------------------------------------
@functools.partial(jax.jit, static_argnames=("cmid", "ch", "num_steps"))
def inception_se_block(x_nchw, w_slab, aux_slab, *, cmid, ch, num_steps=1):
    n, cin, h, w = x_nchw.shape
    hw = h * w
    cout = 2 * cin
    assert n % num_steps == 0, "batch must divide evenly across grid steps"
    nb = n // num_steps
    lanes = nb * hw

    # Precomputed 0/1 boundary masks for the 9 taps of a 'same' 3x3 conv on the
    # flattened, batch-folded spatial axis (constant, DMA'd once).
    pos = jnp.arange(hw, dtype=jnp.int32)
    row, col = pos // w, pos % w
    m = jnp.stack(
        [((row + dh >= 0) & (row + dh < h) & (col + dw >= 0) & (col + dw < w))
         for dh in (-1, 0, 1) for dw in (-1, 0, 1)],
        axis=0).astype(jnp.float32)                       # (9, HW)
    masks = jnp.tile(m, (1, nb))                          # (9, NB*HW)

    # NCHW -> channels-first with the batch folded into the lane axis.
    x_cl = jnp.transpose(x_nchw.reshape(n, cin, hw), (1, 0, 2)).reshape(cin, n * hw)

    kernel = functools.partial(_inception_se_kernel, height=h, width=w,
                               nb=nb, cin=cin, cmid=cmid, ch=ch)

    # NOTE: at these toy sizes everything fits comfortably in the scoped VMEM
    # default; at realistic (large H*W / Cin) sizes add an HW-tiling grid axis
    # and set pltpu.CompilerParams(vmem_limit_bytes=...) explicitly.
    out_cl = pl.pallas_call(
        kernel,
        out_shape=jax.ShapeDtypeStruct((cout, n * hw), x_nchw.dtype),
        grid=(num_steps,),
        in_specs=[
            pl.BlockSpec((cin, lanes), lambda i: (0, i)),
            pl.BlockSpec(masks.shape, lambda i: (0, 0)),
            pl.BlockSpec(w_slab.shape, lambda i: (0, 0)),
            pl.BlockSpec(aux_slab.shape, lambda i: (0, 0)),
        ],
        out_specs=pl.BlockSpec((cout, lanes), lambda i: (0, i)),
        compiler_params=pltpu.CompilerParams(
            dimension_semantics=("parallel",)),
    )(x_cl, masks, w_slab, aux_slab)

    return jnp.transpose(out_cl.reshape(cout, n, hw), (1, 0, 2)).reshape(n, cout, h, w)


# ----------------------------------------------------------------------------
# Parameter construction (Conv2d bias + eval-mode BN folded) and slab packing.
# ----------------------------------------------------------------------------
def make_conv_bn_params(key, kh, kw, c_in, c_out, eps=1e-5):
    k = jax.random.split(key, 6)
    w = jax.random.normal(k[0], (kh, kw, c_in, c_out), jnp.float32) * 0.1
    conv_b = jax.random.normal(k[1], (c_out,), jnp.float32) * 0.1
    gamma = 1.0 + 0.1 * jax.random.normal(k[2], (c_out,), jnp.float32)
    beta = 0.1 * jax.random.normal(k[3], (c_out,), jnp.float32)
    run_mean = 0.1 * jax.random.normal(k[4], (c_out,), jnp.float32)
    run_var = 0.5 + 0.1 * jnp.abs(jax.random.normal(k[5], (c_out,), jnp.float32))
    scale = gamma / jnp.sqrt(run_var + eps)
    bias = beta + (conv_b - run_mean) * scale
    return w, scale, bias


def init_params(key, in_channel, decay=2, se_reduction=2):
    mid = in_channel // decay
    ks = jax.random.split(key, 10)
    return {
        "conv1":  make_conv_bn_params(ks[0], 1, 1, in_channel, mid),
        "conv11": make_conv_bn_params(ks[1], 3, 3, mid, mid),
        "conv21": make_conv_bn_params(ks[2], 3, 3, mid, mid),
        "conv31": make_conv_bn_params(ks[3], 3, 3, mid, mid),
        "conv12": make_conv_bn_params(ks[4], 3, 3, mid, mid),
        "conv32": make_conv_bn_params(ks[5], 3, 3, mid, mid),
        "conv33": make_conv_bn_params(ks[6], 3, 3, mid, mid),
        "conve":  make_conv_bn_params(ks[7], 3, 3, mid * 3, in_channel * 2),
        "se_w1":  jax.random.normal(ks[8], (mid, mid // se_reduction), jnp.float32) * 0.3,
        "se_w2":  jax.random.normal(ks[9], (mid // se_reduction, mid), jnp.float32) * 0.3,
    }


def _fold_conv_flat(w, scale, bias):
    """Fold BN scale into the conv and flatten taps into the contraction dim.

    HWIO weight (KH,KW,Cin,Cout) -> flat (Cout, KH*KW*Cin) with column index
    t*Cin + c (tap-major, matching the in-kernel tap stacking), bias (Cout,1).
    """
    kh, kw, c_in, c_out = w.shape
    wf = w * scale.reshape(1, 1, 1, c_out)
    flat = jnp.transpose(wf.reshape(kh * kw, c_in, c_out), (2, 0, 1))
    return flat.reshape(c_out, kh * kw * c_in), bias.reshape(c_out, 1)


def prepare_params(params):
    """Pack folded weights into one slab, biases + SE weights into another."""
    w1, b1 = _fold_conv_flat(*params["conv1"])        # (Cmid, Cin)
    cmid, _cin = int(w1.shape[0]), int(w1.shape[1])

    f11, bb11 = _fold_conv_flat(*params["conv11"])
    f21, bb21 = _fold_conv_flat(*params["conv21"])
    f31, bb31 = _fold_conv_flat(*params["conv31"])
    wbr = jnp.concatenate([f11, f21, f31], axis=0)     # (3*Cmid, 9*Cmid)
    bbr = jnp.concatenate([bb11, bb21, bb31], axis=0)

    w12, b12 = _fold_conv_flat(*params["conv12"])
    w32, b32 = _fold_conv_flat(*params["conv32"])
    w33, b33 = _fold_conv_flat(*params["conv33"])
    we, be = _fold_conv_flat(*params["conve"])         # (2*Cin, 27*Cmid)

    kmax = we.shape[1]
    pad_k = lambda a: jnp.pad(a, ((0, 0), (0, kmax - a.shape[1])))
    w_slab = jnp.concatenate(
        [pad_k(w1), pad_k(wbr), pad_k(w12), pad_k(w32), pad_k(w33), we], axis=0)

    sew1 = params["se_w1"]                             # (Cmid, Ch)
    sew2t = params["se_w2"].T                          # (Cmid, Ch)
    ch = int(sew1.shape[1])
    pad_c = lambda a: jnp.pad(a, ((0, 0), (0, ch - a.shape[1])))
    aux_slab = jnp.concatenate(
        [pad_c(b1), pad_c(bbr), pad_c(b12), pad_c(b32), pad_c(b33), pad_c(be),
         sew1, sew2t], axis=0)

    return w_slab.astype(jnp.float32), aux_slab.astype(jnp.float32), cmid, ch


# ----------------------------------------------------------------------------
# Pure-JAX f32 reference (independent formulation: explicit padding+slicing).
# ----------------------------------------------------------------------------
def _conv_bn_relu_ref(x, w, scale, bias, pad):
    n, h, wd, cin = x.shape
    kh, kw, _, cout = w.shape
    if pad:
        x = jnp.pad(x, ((0, 0), (pad, pad), (pad, pad), (0, 0)))
    ho, wo = h + 2 * pad - kh + 1, wd + 2 * pad - kw + 1
    acc = jnp.zeros((n, ho, wo, cout), jnp.float32)
    for dh in range(kh):
        for dw in range(kw):
            acc = acc + jnp.einsum("nhwc,cd->nhwd",
                                   x[:, dh:dh + ho, dw:dw + wo, :], w[dh, dw],
                                   precision=lax.Precision.HIGHEST)
    return jnp.maximum(acc * scale + bias, 0.0)


def _reference_forward(x_nchw, params):
    x = jnp.transpose(x_nchw, (0, 2, 3, 1))
    inp = _conv_bn_relu_ref(x, *params["conv1"], pad=0)
    l1 = _conv_bn_relu_ref(inp, *params["conv11"], pad=1)
    l2 = _conv_bn_relu_ref(inp, *params["conv21"], pad=1)
    l3 = _conv_bn_relu_ref(inp, *params["conv31"], pad=1)
    l12 = _conv_bn_relu_ref(l1, *params["conv12"], pad=1)
    l32 = _conv_bn_relu_ref(l3, *params["conv32"], pad=1)
    l33 = _conv_bn_relu_ref(l32, *params["conv33"], pad=1)
    pooled = jnp.mean(inp, axis=(1, 2))
    hdn = jnp.maximum(jnp.dot(pooled, params["se_w1"],
                              precision=lax.Precision.HIGHEST), 0.0)
    gate = jax.nn.sigmoid(jnp.dot(hdn, params["se_w2"],
                                  precision=lax.Precision.HIGHEST))
    se = inp * gate[:, None, None, :]
    cat = jnp.concatenate([l12 * se, l2 * se, l33 * se], axis=-1)
    out = _conv_bn_relu_ref(cat, *params["conve"], pad=1)
    return jnp.transpose(out, (0, 3, 1, 2))


if __name__ == "__main__":
    in_channel, decay = 8, 2
    N, H, W = 2, 16, 16

    x_nchw = jax.random.normal(jax.random.PRNGKey(0), (N, in_channel, H, W), jnp.float32)
    params = init_params(jax.random.PRNGKey(1), in_channel, decay)
    w_slab, aux_slab, cmid, ch = prepare_params(params)

    out = inception_se_block(x_nchw, w_slab, aux_slab, cmid=cmid, ch=ch, num_steps=1)
    out = jax.block_until_ready(out)

    assert out.shape == (N, in_channel * 2, H, W), out.shape
    assert bool(jnp.all(jnp.isfinite(out)))

    ref = _reference_forward(x_nchw, params)
    max_err = float(jnp.max(jnp.abs(out - ref)))
    tol = 3e-2 * (1.0 + float(jnp.max(jnp.abs(ref))))   # bf16 MXU operands
    assert max_err < tol, (max_err, tol)

    print("KERNEL_OK")
</pallas_src>

<mosaic_0001>
module attributes {stable_mosaic.version = 11 : i64} {
  func.func @_inception_se_kernel(%arg0: i32, %arg1: memref<8x512xf32, #tpu.memory_space<vmem>>, %arg2: memref<9x512xf32, #tpu.memory_space<vmem>>, %arg3: memref<44x108xf32, #tpu.memory_space<vmem>>, %arg4: memref<52x2xf32, #tpu.memory_space<vmem>>, %arg5: memref<16x512xf32, #tpu.memory_space<vmem>>) attributes {dimension_semantics = [#tpu.dimension_semantics<parallel>], iteration_bounds = array<i64: 1>, scalar_prefetch = 0 : i64, scratch_operands = 0 : i64, tpu.core_type = #tpu.core_type<tc>, window_params = [{transform_indices = @transform_0, window_bounds = array<i64: 8, 512>}, {pipeline_mode = #tpu.pipeline_mode<synchronous>, transform_indices = @transform_1, window_bounds = array<i64: 9, 512>}, {pipeline_mode = #tpu.pipeline_mode<synchronous>, transform_indices = @transform_2, window_bounds = array<i64: 44, 108>}, {pipeline_mode = #tpu.pipeline_mode<synchronous>, transform_indices = @transform_3, window_bounds = array<i64: 52, 2>}, {transform_indices = @transform_4, window_bounds = array<i64: 16, 512>}]} {
    %c0 = arith.constant 0 : index
    %c0_0 = arith.constant 0 : index
    %0 = vector.load %arg1[%c0, %c0_0] : memref<8x512xf32, #tpu.memory_space<vmem>>, vector<8x512xf32>
    %c0_1 = arith.constant 0 : index
    %c0_2 = arith.constant 0 : index
    %1 = vector.load %arg2[%c0_1, %c0_2] : memref<9x512xf32, #tpu.memory_space<vmem>>, vector<9x512xf32>
    %c0_3 = arith.constant 0 : index
    %c0_4 = arith.constant 0 : index
    %2 = vector.load %arg3[%c0_3, %c0_4] : memref<44x108xf32, #tpu.memory_space<vmem>>, vector<44x108xf32>
    %c0_5 = arith.constant 0 : index
    %c0_6 = arith.constant 0 : index
    %3 = vector.load %arg4[%c0_5, %c0_6] : memref<52x2xf32, #tpu.memory_space<vmem>>, vector<52x2xf32>
    %4 = vector.extract_strided_slice %2 {offsets = [0, 0], sizes = [4, 8], strides = [1, 1]} : vector<44x108xf32> to vector<4x8xf32>
    %5 = arith.truncf %4 : vector<4x8xf32> to vector<4x8xbf16>
    %6 = vector.extract_strided_slice %2 {offsets = [4, 0], sizes = [12, 36], strides = [1, 1]} : vector<44x108xf32> to vector<12x36xf32>
    %7 = arith.truncf %6 : vector<12x36xf32> to vector<12x36xbf16>
    %8 = vector.extract_strided_slice %2 {offsets = [16, 0], sizes = [4, 36], strides = [1, 1]} : vector<44x108xf32> to vector<4x36xf32>
    %9 = arith.truncf %8 : vector<4x36xf32> to vector<4x36xbf16>
    %10 = vector.extract_strided_slice %2 {offsets = [20, 0], sizes = [4, 36], strides = [1, 1]} : vector<44x108xf32> to vector<4x36xf32>
    %11 = arith.truncf %10 : vector<4x36xf32> to vector<4x36xbf16>
    %12 = vector.extract_strided_slice %2 {offsets = [24, 0], sizes = [4, 36], strides = [1, 1]} : vector<44x108xf32> to vector<4x36xf32>
    %13 = arith.truncf %12 : vector<4x36xf32> to vector<4x36xbf16>
    %14 = vector.extract_strided_slice %2 {offsets = [28, 0], sizes = [16, 108], strides = [1, 1]} : vector<44x108xf32> to vector<16x108xf32>
    %15 = arith.truncf %14 : vector<16x108xf32> to vector<16x108xbf16>
    %16 = vector.extract_strided_slice %3 {offsets = [0, 0], sizes = [4, 1], strides = [1, 1]} : vector<52x2xf32> to vector<4x1xf32>
    %17 = vector.extract_strided_slice %3 {offsets = [4, 0], sizes = [12, 1], strides = [1, 1]} : vector<52x2xf32> to vector<12x1xf32>
    %18 = vector.extract_strided_slice %3 {offsets = [16, 0], sizes = [4, 1], strides = [1, 1]} : vector<52x2xf32> to vector<4x1xf32>
    %19 = vector.extract_strided_slice %3 {offsets = [20, 0], sizes = [4, 1], strides = [1, 1]} : vector<52x2xf32> to vector<4x1xf32>
    %20 = vector.extract_strided_slice %3 {offsets = [24, 0], sizes = [4, 1], strides = [1, 1]} : vector<52x2xf32> to vector<4x1xf32>
    %21 = vector.extract_strided_slice %3 {offsets = [28, 0], sizes = [16, 1], strides = [1, 1]} : vector<52x2xf32> to vector<16x1xf32>
    %22 = vector.extract_strided_slice %3 {offsets = [44, 0], sizes = [4, 2], strides = [1, 1]} : vector<52x2xf32> to vector<4x2xf32>
    %23 = vector.extract_strided_slice %3 {offsets = [48, 0], sizes = [4, 2], strides = [1, 1]} : vector<52x2xf32> to vector<4x2xf32>
    %24 = arith.truncf %0 : vector<8x512xf32> to vector<8x512xbf16>
    %cst = arith.constant dense<0.000000e+00> : vector<4x512xf32>
    %25 = tpu.matmul %5, %24, %cst {dimension_numbers = #tpu.dot_dimension_numbers<[1], [0], [0], [1], [0, 0, 1, 1], [], []>} : vector<4x8xbf16>, vector<8x512xbf16>, vector<4x512xf32> -> vector<4x512xf32>
    %26 = vector.broadcast %16 : vector<4x1xf32> to vector<4x512xf32>
    %27 = arith.addf %25, %26 : vector<4x512xf32>
    %cst_7 = arith.constant 0.000000e+00 : f32
    %28 = vector.broadcast %cst_7 : f32 to vector<4x512xf32>
    %29 = arith.maximumf %27, %28 : vector<4x512xf32>
    %c17_i32 = arith.constant 17 : i32
    %30 = tpu.dynamic_rotate %29 by %c17_i32 dim 1 : vector<4x512xf32>, i32 -> vector<4x512xf32>
    %31 = vector.extract_strided_slice %1 {offsets = [0, 0], sizes = [1, 512], strides = [1, 1]} : vector<9x512xf32> to vector<1x512xf32>
    %32 = vector.broadcast %31 : vector<1x512xf32> to vector<4x512xf32>
    %33 = arith.mulf %30, %32 : vector<4x512xf32>
    %c16_i32 = arith.constant 16 : i32
    %34 = tpu.dynamic_rotate %29 by %c16_i32 dim 1 : vector<4x512xf32>, i32 -> vector<4x512xf32>
    %35 = vector.extract_strided_slice %1 {offsets = [1, 0], sizes = [1, 512], strides = [1, 1]} : vector<9x512xf32> to vector<1x512xf32>
    %36 = vector.broadcast %35 : vector<1x512xf32> to vector<4x512xf32>
    %37 = arith.mulf %34, %36 : vector<4x512xf32>
    %c15_i32 = arith.constant 15 : i32
    %38 = tpu.dynamic_rotate %29 by %c15_i32 dim 1 : vector<4x512xf32>, i32 -> vector<4x512xf32>
    %39 = vector.extract_strided_slice %1 {offsets = [2, 0], sizes = [1, 512], strides = [1, 1]} : vector<9x512xf32> to vector<1x512xf32>
    %40 = vector.broadcast %39 : vector<1x512xf32> to vector<4x512xf32>
    %41 = arith.mulf %38, %40 : vector<4x512xf32>
    %c1_i32 = arith.constant 1 : i32
    %42 = tpu.dynamic_rotate %29 by %c1_i32 dim 1 : vector<4x512xf32>, i32 -> vector<4x512xf32>
    %43 = vector.extract_strided_slice %1 {offsets = [3, 0], sizes = [1, 512], strides = [1, 1]} : vector<9x512xf32> to vector<1x512xf32>
    %44 = vector.broadcast %43 : vector<1x512xf32> to vector<4x512xf32>
    %45 = arith.mulf %42, %44 : vector<4x512xf32>
    %c511_i32 = arith.constant 511 : i32
    %46 = tpu.dynamic_rotate %29 by %c511_i32 dim 1 : vector<4x512xf32>, i32 -> vector<4x512xf32>
    %47 = vector.extract_strided_slice %1 {offsets = [5, 0], sizes = [1, 512], strides = [1, 1]} : vector<9x512xf32> to vector<1x512xf32>
    %48 = vector.broadcast %47 : vector<1x512xf32> to vector<4x512xf32>
    %49 = arith.mulf %46, %48 : vector<4x512xf32>
    %c497_i32 = arith.constant 497 : i32
    %50 = tpu.dynamic_rotate %29 by %c497_i32 dim 1 : vector<4x512xf32>, i32 -> vector<4x512xf32>
    %51 = vector.extract_strided_slice %1 {offsets = [6, 0], sizes = [1, 512], strides = [1, 1]} : vector<9x512xf32> to vector<1x512xf32>
    %52 = vector.broadcast %51 : vector<1x512xf32> to vector<4x512xf32>
    %53 = arith.mulf %50, %52 : vector<4x512xf32>
    %c496_i32 = arith.constant 496 : i32
    %54 = tpu.dynamic_rotate %29 by %c496_i32 dim 1 : vector<4x512xf32>, i32 -> vector<4x512xf32>
    %55 = vector.extract_strided_slice %1 {offsets = [7, 0], sizes = [1, 512], strides = [1, 1]} : vector<9x512xf32> to vector<1x512xf32>
    %56 = vector.broadcast %55 : vector<1x512xf32> to vector<4x512xf32>
    %57 = arith.mulf %54, %56 : vector<4x512xf32>
    %c495_i32 = arith.constant 495 : i32
    %58 = tpu.dynamic_rotate %29 by %c495_i32 dim 1 : vector<4x512xf32>, i32 -> vector<4x512xf32>
    %59 = vector.extract_strided_slice %1 {offsets = [8, 0], sizes = [1, 512], strides = [1, 1]} : vector<9x512xf32> to vector<1x512xf32>
    %60 = vector.broadcast %59 : vector<1x512xf32> to vector<4x512xf32>
    %61 = arith.mulf %58, %60 : vector<4x512xf32>
    %62 = tpu.concatenate %33, %37, %41, %45, %29, %49, %53, %57, %61 in 0 : vector<4x512xf32>, vector<4x512xf32>, vector<4x512xf32>, vector<4x512xf32>, vector<4x512xf32>, vector<4x512xf32>, vector<4x512xf32>, vector<4x512xf32>, vector<4x512xf32> -> vector<36x512xf32>
    %63 = arith.truncf %62 : vector<36x512xf32> to vector<36x512xbf16>
    %cst_8 = arith.constant dense<0.000000e+00> : vector<12x512xf32>
    %64 = tpu.matmul %7, %63, %cst_8 {dimension_numbers = #tpu.dot_dimension_numbers<[1], [0], [0], [1], [0, 0, 1, 1], [], []>} : vector<12x36xbf16>, vector<36x512xbf16>, vector<12x512xf32> -> vector<12x512xf32>
    %65 = vector.broadcast %17 : vector<12x1xf32> to vector<12x512xf32>
    %66 = arith.addf %64, %65 : vector<12x512xf32>
    %cst_9 = arith.constant 0.000000e+00 : f32
    %67 = vector.broadcast %cst_9 : f32 to vector<12x512xf32>
    %68 = arith.maximumf %66, %67 : vector<12x512xf32>
    %69 = vector.extract_strided_slice %68 {offsets = [0, 0], sizes = [4, 512], strides = [1, 1]} : vector<12x512xf32> to vector<4x512xf32>
    %70 = vector.extract_strided_slice %68 {offsets = [4, 0], sizes = [4, 512], strides = [1, 1]} : vector<12x512xf32> to vector<4x512xf32>
    %71 = vector.extract_strided_slice %68 {offsets = [8, 0], sizes = [4, 512], strides = [1, 1]} : vector<12x512xf32> to vector<4x512xf32>
    %c17_i32_10 = arith.constant 17 : i32
    %72 = tpu.dynamic_rotate %69 by %c17_i32_10 dim 1 : vector<4x512xf32>, i32 -> vector<4x512xf32>
    %73 = vector.extract_strided_slice %1 {offsets = [0, 0], sizes = [1, 512], strides = [1, 1]} : vector<9x512xf32> to vector<1x512xf32>
    %74 = vector.broadcast %73 : vector<1x512xf32> to vector<4x512xf32>
    %75 = arith.mulf %72, %74 : vector<4x512xf32>
    %c16_i32_11 = arith.constant 16 : i32
    %76 = tpu.dynamic_rotate %69 by %c16_i32_11 dim 1 : vector<4x512xf32>, i32 -> vector<4x512xf32>
    %77 = vector.extract_strided_slice %1 {offsets = [1, 0], sizes = [1, 512], strides = [1, 1]} : vector<9x512xf32> to vector<1x512xf32>
    %78 = vector.broadcast %77 : vector<1x512xf32> to vector<4x512xf32>
    %79 = arith.mulf %76, %78 : vector<4x512xf32>
    %c15_i32_12 = arith.constant 15 : i32
    %80 = tpu.dynamic_rotate %69 by %c15_i32_12 dim 1 : vector<4x512xf32>, i32 -> vector<4x512xf32>
    %81 = vector.extract_strided_slice %1 {offsets = [2, 0], sizes = [1, 512], strides = [1, 1]} : vector<9x512xf32> to vector<1x512xf32>
    %82 = vector.broadcast %81 : vector<1x512xf32> to vector<4x512xf32>
    %83 = arith.mulf %80, %82 : vector<4x512xf32>
    %c1_i32_13 = arith.constant 1 : i32
    %84 = tpu.dynamic_rotate %69 by %c1_i32_13 dim 1 : vector<4x512xf32>, i32 -> vector<4x512xf32>
    %85 = vector.extract_strided_slice %1 {offsets = [3, 0], sizes = [1, 512], strides = [1, 1]} : vector<9x512xf32> to vector<1x512xf32>
    %86 = vector.broadcast %85 : vector<1x512xf32> to vector<4x512xf32>
    %87 = arith.mulf %84, %86 : vector<4x512xf32>
    %c511_i32_14 = arith.constant 511 : i32
    %88 = tpu.dynamic_rotate %69 by %c511_i32_14 dim 1 : vector<4x512xf32>, i32 -> vector<4x512xf32>
    %89 = vector.extract_strided_slice %1 {offsets = [5, 0], sizes = [1, 512], strides = [1, 1]} : vector<9x512xf32> to vector<1x512xf32>
    %90 = vector.broadcast %89 : vector<1x512xf32> to vector<4x512xf32>
    %91 = arith.mulf %88, %90 : vector<4x512xf32>
    %c497_i32_15 = arith.constant 497 : i32
    %92 = tpu.dynamic_rotate %69 by %c497_i32_15 dim 1 : vector<4x512xf32>, i32 -> vector<4x512xf32>
    %93 = vector.extract_strided_slice %1 {offsets = [6, 0], sizes = [1, 512], strides = [1, 1]} : vector<9x512xf32> to vector<1x512xf32>
    %94 = vector.broadcast %93 : vector<1x512xf32> to vector<4x512xf32>
    %95 = arith.mulf %92, %94 : vector<4x512xf32>
    %c496_i32_16 = arith.constant 496 : i32
    %96 = tpu.dynamic_rotate %69 by %c496_i32_16 dim 1 : vector<4x512xf32>, i32 -> vector<4x512xf32>
    %97 = vector.extract_strided_slice %1 {offsets = [7, 0], sizes = [1, 512], strides = [1, 1]} : vector<9x512xf32> to vector<1x512xf32>
    %98 = vector.broadcast %97 : vector<1x512xf32> to vector<4x512xf32>
    %99 = arith.mulf %96, %98 : vector<4x512xf32>
    %c495_i32_17 = arith.constant 495 : i32
    %100 = tpu.dynamic_rotate %69 by %c495_i32_17 dim 1 : vector<4x512xf32>, i32 -> vector<4x512xf32>
    %101 = vector.extract_strided_slice %1 {offsets = [8, 0], sizes = [1, 512], strides = [1, 1]} : vector<9x512xf32> to vector<1x512xf32>
    %102 = vector.broadcast %101 : vector<1x512xf32> to vector<4x512xf32>
    %103 = arith.mulf %100, %102 : vector<4x512xf32>
    %104 = tpu.concatenate %75, %79, %83, %87, %69, %91, %95, %99, %103 in 0 : vector<4x512xf32>, vector<4x512xf32>, vector<4x512xf32>, vector<4x512xf32>, vector<4x512xf32>, vector<4x512xf32>, vector<4x512xf32>, vector<4x512xf32>, vector<4x512xf32> -> vector<36x512xf32>
    %105 = arith.truncf %104 : vector<36x512xf32> to vector<36x512xbf16>
    %cst_18 = arith.constant dense<0.000000e+00> : vector<4x512xf32>
    %106 = tpu.matmul %9, %105, %cst_18 {dimension_numbers = #tpu.dot_dimension_numbers<[1], [0], [0], [1], [0, 0, 1, 1], [], []>} : vector<4x36xbf16>, vector<36x512xbf16>, vector<4x512xf32> -> vector<4x512xf32>
    %107 = vector.broadcast %18 : vector<4x1xf32> to vector<4x512xf32>
    %108 = arith.addf %106, %107 : vector<4x512xf32>
    %cst_19 = arith.constant 0.000000e+00 : f32
    %109 = vector.broadcast %cst_19 : f32 to vector<4x512xf32>
    %110 = arith.maximumf %108, %109 : vector<4x512xf32>
    %c17_i32_20 = arith.constant 17 : i32
    %111 = tpu.dynamic_rotate %71 by %c17_i32_20 dim 1 : vector<4x512xf32>, i32 -> vector<4x512xf32>
    %112 = vector.extract_strided_slice %1 {offsets = [0, 0], sizes = [1, 512], strides = [1, 1]} : vector<9x512xf32> to vector<1x512xf32>
    %113 = vector.broadcast %112 : vector<1x512xf32> to vector<4x512xf32>
    %114 = arith.mulf %111, %113 : vector<4x512xf32>
    %c16_i32_21 = arith.constant 16 : i32
    %115 = tpu.dynamic_rotate %71 by %c16_i32_21 dim 1 : vector<4x512xf32>, i32 -> vector<4x512xf32>
    %116 = vector.extract_strided_slice %1 {offsets = [1, 0], sizes = [1, 512], strides = [1, 1]} : vector<9x512xf32> to vector<1x512xf32>
    %117 = vector.broadcast %116 : vector<1x512xf32> to vector<4x512xf32>
    %118 = arith.mulf %115, %117 : vector<4x512xf32>
    %c15_i32_22 = arith.constant 15 : i32
    %119 = tpu.dynamic_rotate %71 by %c15_i32_22 dim 1 : vector<4x512xf32>, i32 -> vector<4x512xf32>
    %120 = vector.extract_strided_slice %1 {offsets = [2, 0], sizes = [1, 512], strides = [1, 1]} : vector<9x512xf32> to vector<1x512xf32>
    %121 = vector.broadcast %120 : vector<1x512xf32> to vector<4x512xf32>
    %122 = arith.mulf %119, %121 : vector<4x512xf32>
    %c1_i32_23 = arith.constant 1 : i32
    %123 = tpu.dynamic_rotate %71 by %c1_i32_23 dim 1 : vector<4x512xf32>, i32 -> vector<4x512xf32>
    %124 = vector.extract_strided_slice %1 {offsets = [3, 0], sizes = [1, 512], strides = [1, 1]} : vector<9x512xf32> to vector<1x512xf32>
    %125 = vector.broadcast %124 : vector<1x512xf32> to vector<4x512xf32>
    %126 = arith.mulf %123, %125 : vector<4x512xf32>
    %c511_i32_24 = arith.constant 511 : i32
    %127 = tpu.dynamic_rotate %71 by %c511_i32_24 dim 1 : vector<4x512xf32>, i32 -> vector<4x512xf32>
    %128 = vector.extract_strided_slice %1 {offsets = [5, 0], sizes = [1, 512], strides = [1, 1]} : vector<9x512xf32> to vector<1x512xf32>
    %129 = vector.broadcast %128 : vector<1x512xf32> to vector<4x512xf32>
    %130 = arith.mulf %127, %129 : vector<4x512xf32>
    %c497_i32_25 = arith.constant 497 : i32
    %131 = tpu.dynamic_rotate %71 by %c497_i32_25 dim 1 : vector<4x512xf32>, i32 -> vector<4x512xf32>
    %132 = vector.extract_strided_slice %1 {offsets = [6, 0], sizes = [1, 512], strides = [1, 1]} : vector<9x512xf32> to vector<1x512xf32>
    %133 = vector.broadcast %132 : vector<1x512xf32> to vector<4x512xf32>
    %134 = arith.mulf %131, %133 : vector<4x512xf32>
    %c496_i32_26 = arith.constant 496 : i32
    %135 = tpu.dynamic_rotate %71 by %c496_i32_26 dim 1 : vector<4x512xf32>, i32 -> vector<4x512xf32>
    %136 = vector.extract_strided_slice %1 {offsets = [7, 0], sizes = [1, 512], strides = [1, 1]} : vector<9x512xf32> to vector<1x512xf32>
    %137 = vector.broadcast %136 : vector<1x512xf32> to vector<4x512xf32>
    %138 = arith.mulf %135, %137 : vector<4x512xf32>
    %c495_i32_27 = arith.constant 495 : i32
    %139 = tpu.dynamic_rotate %71 by %c495_i32_27 dim 1 : vector<4x512xf32>, i32 -> vector<4x512xf32>
    %140 = vector.extract_strided_slice %1 {offsets = [8, 0], sizes = [1, 512], strides = [1, 1]} : vector<9x512xf32> to vector<1x512xf32>
    %141 = vector.broadcast %140 : vector<1x512xf32> to vector<4x512xf32>
    %142 = arith.mulf %139, %141 : vector<4x512xf32>
    %143 = tpu.concatenate %114, %118, %122, %126, %71, %130, %134, %138, %142 in 0 : vector<4x512xf32>, vector<4x512xf32>, vector<4x512xf32>, vector<4x512xf32>, vector<4x512xf32>, vector<4x512xf32>, vector<4x512xf32>, vector<4x512xf32>, vector<4x512xf32> -> vector<36x512xf32>
    %144 = arith.truncf %143 : vector<36x512xf32> to vector<36x512xbf16>
    %cst_28 = arith.constant dense<0.000000e+00> : vector<4x512xf32>
    %145 = tpu.matmul %11, %144, %cst_28 {dimension_numbers = #tpu.dot_dimension_numbers<[1], [0], [0], [1], [0, 0, 1, 1], [], []>} : vector<4x36xbf16>, vector<36x512xbf16>, vector<4x512xf32> -> vector<4x512xf32>
    %146 = vector.broadcast %19 : vector<4x1xf32> to vector<4x512xf32>
    %147 = arith.addf %145, %146 : vector<4x512xf32>
    %cst_29 = arith.constant 0.000000e+00 : f32
    %148 = vector.broadcast %cst_29 : f32 to vector<4x512xf32>
    %149 = arith.maximumf %147, %148 : vector<4x512xf32>
    %c17_i32_30 = arith.constant 17 : i32
    %150 = tpu.dynamic_rotate %149 by %c17_i32_30 dim 1 : vector<4x512xf32>, i32 -> vector<4x512xf32>
    %151 = vector.extract_strided_slice %1 {offsets = [0, 0], sizes = [1, 512], strides = [1, 1]} : vector<9x512xf32> to vector<1x512xf32>
    %152 = vector.broadcast %151 : vector<1x512xf32> to vector<4x512xf32>
    %153 = arith.mulf %150, %152 : vector<4x512xf32>
    %c16_i32_31 = arith.constant 16 : i32
    %154 = tpu.dynamic_rotate %149 by %c16_i32_31 dim 1 : vector<4x512xf32>, i32 -> vector<4x512xf32>
    %155 = vector.extract_strided_slice %1 {offsets = [1, 0], sizes = [1, 512], strides = [1, 1]} : vector<9x512xf32> to vector<1x512xf32>
    %156 = vector.broadcast %155 : vector<1x512xf32> to vector<4x512xf32>
    %157 = arith.mulf %154, %156 : vector<4x512xf32>
    %c15_i32_32 = arith.constant 15 : i32
    %158 = tpu.dynamic_rotate %149 by %c15_i32_32 dim 1 : vector<4x512xf32>, i32 -> vector<4x512xf32>
    %159 = vector.extract_strided_slice %1 {offsets = [2, 0], sizes = [1, 512], strides = [1, 1]} : vector<9x512xf32> to vector<1x512xf32>
    %160 = vector.broadcast %159 : vector<1x512xf32> to vector<4x512xf32>
    %161 = arith.mulf %158, %160 : vector<4x512xf32>
    %c1_i32_33 = arith.constant 1 : i32
    %162 = tpu.dynamic_rotate %149 by %c1_i32_33 dim 1 : vector<4x512xf32>, i32 -> vector<4x512xf32>
    %163 = vector.extract_strided_slice %1 {offsets = [3, 0], sizes = [1, 512], strides = [1, 1]} : vector<9x512xf32> to vector<1x512xf32>
    %164 = vector.broadcast %163 : vector<1x512xf32> to vector<4x512xf32>
    %165 = arith.mulf %162, %164 : vector<4x512xf32>
    %c511_i32_34 = arith.constant 511 : i32
    %166 = tpu.dynamic_rotate %149 by %c511_i32_34 dim 1 : vector<4x512xf32>, i32 -> vector<4x512xf32>
    %167 = vector.extract_strided_slice %1 {offsets = [5, 0], sizes = [1, 512], strides = [1, 1]} : vector<9x512xf32> to vector<1x512xf32>
    %168 = vector.broadcast %167 : vector<1x512xf32> to vector<4x512xf32>
    %169 = arith.mulf %166, %168 : vector<4x512xf32>
    %c497_i32_35 = arith.constant 497 : i32
    %170 = tpu.dynamic_rotate %149 by %c497_i32_35 dim 1 : vector<4x512xf32>, i32 -> vector<4x512xf32>
    %171 = vector.extract_strided_slice %1 {offsets = [6, 0], sizes = [1, 512], strides = [1, 1]} : vector<9x512xf32> to vector<1x512xf32>
    %172 = vector.broadcast %171 : vector<1x512xf32> to vector<4x512xf32>
    %173 = arith.mulf %170, %172 : vector<4x512xf32>
    %c496_i32_36 = arith.constant 496 : i32
    %174 = tpu.dynamic_rotate %149 by %c496_i32_36 dim 1 : vector<4x512xf32>, i32 -> vector<4x512xf32>
    %175 = vector.extract_strided_slice %1 {offsets = [7, 0], sizes = [1, 512], strides = [1, 1]} : vector<9x512xf32> to vector<1x512xf32>
    %176 = vector.broadcast %175 : vector<1x512xf32> to vector<4x512xf32>
    %177 = arith.mulf %174, %176 : vector<4x512xf32>
    %c495_i32_37 = arith.constant 495 : i32
    %178 = tpu.dynamic_rotate %149 by %c495_i32_37 dim 1 : vector<4x512xf32>, i32 -> vector<4x512xf32>
    %179 = vector.extract_strided_slice %1 {offsets = [8, 0], sizes = [1, 512], strides = [1, 1]} : vector<9x512xf32> to vector<1x512xf32>
    %180 = vector.broadcast %179 : vector<1x512xf32> to vector<4x512xf32>
    %181 = arith.mulf %178, %180 : vector<4x512xf32>
    %182 = tpu.concatenate %153, %157, %161, %165, %149, %169, %173, %177, %181 in 0 : vector<4x512xf32>, vector<4x512xf32>, vector<4x512xf32>, vector<4x512xf32>, vector<4x512xf32>, vector<4x512xf32>, vector<4x512xf32>, vector<4x512xf32>, vector<4x512xf32> -> vector<36x512xf32>
    %183 = arith.truncf %182 : vector<36x512xf32> to vector<36x512xbf16>
    %cst_38 = arith.constant dense<0.000000e+00> : vector<4x512xf32>
    %184 = tpu.matmul %13, %183, %cst_38 {dimension_numbers = #tpu.dot_dimension_numbers<[1], [0], [0], [1], [0, 0, 1, 1], [], []>} : vector<4x36xbf16>, vector<36x512xbf16>, vector<4x512xf32> -> vector<4x512xf32>
    %185 = vector.broadcast %20 : vector<4x1xf32> to vector<4x512xf32>
    %186 = arith.addf %184, %185 : vector<4x512xf32>
    %cst_39 = arith.constant 0.000000e+00 : f32
    %187 = vector.broadcast %cst_39 : f32 to vector<4x512xf32>
    %188 = arith.maximumf %186, %187 : vector<4x512xf32>
    %189 = vector.extract_strided_slice %29 {offsets = [0, 0], sizes = [4, 256], strides = [1, 1]} : vector<4x512xf32> to vector<4x256xf32>
    %cst_40 = arith.constant dense<0.000000e+00> : vector<4xf32>
    %190 = vector.multi_reduction <add>, %189, %cst_40 [1] : vector<4x256xf32> to vector<4xf32>
    %191 = vector.shape_cast %190 : vector<4xf32> to vector<4x1xf32>
    %cst_41 = arith.constant 3.906250e-03 : f32
    %192 = vector.broadcast %cst_41 : f32 to vector<4x1xf32>
    %193 = arith.mulf %191, %192 : vector<4x1xf32>
    %194 = vector.broadcast %193 : vector<4x1xf32> to vector<4x2xf32>
    %195 = arith.mulf %22, %194 : vector<4x2xf32>
    %cst_42 = arith.constant dense<0.000000e+00> : vector<2xf32>
    %196 = vector.multi_reduction <add>, %195, %cst_42 [0] : vector<4x2xf32> to vector<2xf32>
    %197 = vector.shape_cast %196 : vector<2xf32> to vector<1x2xf32>
    %cst_43 = arith.constant 0.000000e+00 : f32
    %198 = vector.broadcast %cst_43 : f32 to vector<1x2xf32>
    %199 = arith.maximumf %197, %198 : vector<1x2xf32>
    %200 = vector.broadcast %199 : vector<1x2xf32> to vector<4x2xf32>
    %201 = arith.mulf %23, %200 : vector<4x2xf32>
    %cst_44 = arith.constant dense<0.000000e+00> : vector<4xf32>
    %202 = vector.multi_reduction <add>, %201, %cst_44 [1] : vector<4x2xf32> to vector<4xf32>
    %203 = vector.shape_cast %202 : vector<4xf32> to vector<4x1xf32>
    %204 = arith.negf %203 : vector<4x1xf32>
    %205 = math.exp %204 : vector<4x1xf32>
    %cst_45 = arith.constant 1.000000e+00 : f32
    %206 = vector.broadcast %cst_45 : f32 to vector<4x1xf32>
    %207 = arith.addf %206, %205 : vector<4x1xf32>
    %208 = arith.divf %206, %207 : vector<4x1xf32>
    %209 = vector.extract_strided_slice %29 {offsets = [0, 256], sizes = [4, 256], strides = [1, 1]} : vector<4x512xf32> to vector<4x256xf32>
    %cst_46 = arith.constant dense<0.000000e+00> : vector<4xf32>
    %210 = vector.multi_reduction <add>, %209, %cst_46 [1] : vector<4x256xf32> to vector<4xf32>
    %211 = vector.shape_cast %210 : vector<4xf32> to vector<4x1xf32>
    %cst_47 = arith.constant 3.906250e-03 : f32
    %212 = vector.broadcast %cst_47 : f32 to vector<4x1xf32>
    %213 = arith.mulf %211, %212 : vector<4x1xf32>
    %214 = vector.broadcast %213 : vector<4x1xf32> to vector<4x2xf32>
    %215 = arith.mulf %22, %214 : vector<4x2xf32>
    %cst_48 = arith.constant dense<0.000000e+00> : vector<2xf32>
    %216 = vector.multi_reduction <add>, %215, %cst_48 [0] : vector<4x2xf32> to vector<2xf32>
    %217 = vector.shape_cast %216 : vector<2xf32> to vector<1x2xf32>
    %cst_49 = arith.constant 0.000000e+00 : f32
    %218 = vector.broadcast %cst_49 : f32 to vector<1x2xf32>
    %219 = arith.maximumf %217, %218 : vector<1x2xf32>
    %220 = vector.broadcast %219 : vector<1x2xf32> to vector<4x2xf32>
    %221 = arith.mulf %23, %220 : vector<4x2xf32>
    %cst_50 = arith.constant dense<0.000000e+00> : vector<4xf32>
    %222 = vector.multi_reduction <add>, %221, %cst_50 [1] : vector<4x2xf32> to vector<4xf32>
    %223 = vector.shape_cast %222 : vector<4xf32> to vector<4x1xf32>
    %224 = arith.negf %223 : vector<4x1xf32>
    %225 = math.exp %224 : vector<4x1xf32>
    %cst_51 = arith.constant 1.000000e+00 : f32
    %226 = vector.broadcast %cst_51 : f32 to vector<4x1xf32>
    %227 = arith.addf %226, %225 : vector<4x1xf32>
    %228 = arith.divf %226, %227 : vector<4x1xf32>
    %229 = vector.extract_strided_slice %29 {offsets = [0, 0], sizes = [4, 256], strides = [1, 1]} : vector<4x512xf32> to vector<4x256xf32>
    %230 = vector.broadcast %208 : vector<4x1xf32> to vector<4x256xf32>
    %231 = arith.mulf %229, %230 : vector<4x256xf32>
    %232 = vector.extract_strided_slice %29 {offsets = [0, 256], sizes = [4, 256], strides = [1, 1]} : vector<4x512xf32> to vector<4x256xf32>
    %233 = vector.broadcast %228 : vector<4x1xf32> to vector<4x256xf32>
    %234 = arith.mulf %232, %233 : vector<4x256xf32>
    %235 = tpu.concatenate %231, %234 in 1 : vector<4x256xf32>, vector<4x256xf32> -> vector<4x512xf32>
    %236 = arith.mulf %110, %235 : vector<4x512xf32>
    %237 = arith.mulf %70, %235 : vector<4x512xf32>
    %238 = arith.mulf %188, %235 : vector<4x512xf32>
    %239 = tpu.concatenate %236, %237, %238 in 0 : vector<4x512xf32>, vector<4x512xf32>, vector<4x512xf32> -> vector<12x512xf32>
    %c17_i32_52 = arith.constant 17 : i32
    %240 = tpu.dynamic_rotate %239 by %c17_i32_52 dim 1 : vector<12x512xf32>, i32 -> vector<12x512xf32>
    %241 = vector.extract_strided_slice %1 {offsets = [0, 0], sizes = [1, 512], strides = [1, 1]} : vector<9x512xf32> to vector<1x512xf32>
    %242 = vector.broadcast %241 : vector<1x512xf32> to vector<12x512xf32>
    %243 = arith.mulf %240, %242 : vector<12x512xf32>
    %c16_i32_53 = arith.constant 16 : i32
    %244 = tpu.dynamic_rotate %239 by %c16_i32_53 dim 1 : vector<12x512xf32>, i32 -> vector<12x512xf32>
    %245 = vector.extract_strided_slice %1 {offsets = [1, 0], sizes = [1, 512], strides = [1, 1]} : vector<9x512xf32> to vector<1x512xf32>
    %246 = vector.broadcast %245 : vector<1x512xf32> to vector<12x512xf32>
    %247 = arith.mulf %244, %246 : vector<12x512xf32>
    %c15_i32_54 = arith.constant 15 : i32
    %248 = tpu.dynamic_rotate %239 by %c15_i32_54 dim 1 : vector<12x512xf32>, i32 -> vector<12x512xf32>
    %249 = vector.extract_strided_slice %1 {offsets = [2, 0], sizes = [1, 512], strides = [1, 1]} : vector<9x512xf32> to vector<1x512xf32>
    %250 = vector.broadcast %249 : vector<1x512xf32> to vector<12x512xf32>
    %251 = arith.mulf %248, %250 : vector<12x512xf32>
    %c1_i32_55 = arith.constant 1 : i32
    %252 = tpu.dynamic_rotate %239 by %c1_i32_55 dim 1 : vector<12x512xf32>, i32 -> vector<12x512xf32>
    %253 = vector.extract_strided_slice %1 {offsets = [3, 0], sizes = [1, 512], strides = [1, 1]} : vector<9x512xf32> to vector<1x512xf32>
    %254 = vector.broadcast %253 : vector<1x512xf32> to vector<12x512xf32>
    %255 = arith.mulf %252, %254 : vector<12x512xf32>
    %c511_i32_56 = arith.constant 511 : i32
    %256 = tpu.dynamic_rotate %239 by %c511_i32_56 dim 1 : vector<12x512xf32>, i32 -> vector<12x512xf32>
    %257 = vector.extract_strided_slice %1 {offsets = [5, 0], sizes = [1, 512], strides = [1, 1]} : vector<9x512xf32> to vector<1x512xf32>
    %258 = vector.broadcast %257 : vector<1x512xf32> to vector<12x512xf32>
    %259 = arith.mulf %256, %258 : vector<12x512xf32>
    %c497_i32_57 = arith.constant 497 : i32
    %260 = tpu.dynamic_rotate %239 by %c497_i32_57 dim 1 : vector<12x512xf32>, i32 -> vector<12x512xf32>
    %261 = vector.extract_strided_slice %1 {offsets = [6, 0], sizes = [1, 512], strides = [1, 1]} : vector<9x512xf32> to vector<1x512xf32>
    %262 = vector.broadcast %261 : vector<1x512xf32> to vector<12x512xf32>
    %263 = arith.mulf %260, %262 : vector<12x512xf32>
    %c496_i32_58 = arith.constant 496 : i32
    %264 = tpu.dynamic_rotate %239 by %c496_i32_58 dim 1 : vector<12x512xf32>, i32 -> vector<12x512xf32>
    %265 = vector.extract_strided_slice %1 {offsets = [7, 0], sizes = [1, 512], strides = [1, 1]} : vector<9x512xf32> to vector<1x512xf32>
    %266 = vector.broadcast %265 : vector<1x512xf32> to vector<12x512xf32>
    %267 = arith.mulf %264, %266 : vector<12x512xf32>
    %c495_i32_59 = arith.constant 495 : i32
    %268 = tpu.dynamic_rotate %239 by %c495_i32_59 dim 1 : vector<12x512xf32>, i32 -> vector<12x512xf32>
    %269 = vector.extract_strided_slice %1 {offsets = [8, 0], sizes = [1, 512], strides = [1, 1]} : vector<9x512xf32> to vector<1x512xf32>
    %270 = vector.broadcast %269 : vector<1x512xf32> to vector<12x512xf32>
    %271 = arith.mulf %268, %270 : vector<12x512xf32>
    %272 = tpu.concatenate %243, %247, %251, %255, %239, %259, %263, %267, %271 in 0 : vector<12x512xf32>, vector<12x512xf32>, vector<12x512xf32>, vector<12x512xf32>, vector<12x512xf32>, vector<12x512xf32>, vector<12x512xf32>, vector<12x512xf32>, vector<12x512xf32> -> vector<108x512xf32>
    %273 = arith.truncf %272 : vector<108x512xf32> to vector<108x512xbf16>
    %cst_60 = arith.constant dense<0.000000e+00> : vector<16x512xf32>
    %274 = tpu.matmul %15, %273, %cst_60 {dimension_numbers = #tpu.dot_dimension_numbers<[1], [0], [0], [1], [0, 0, 1, 1], [], []>} : vector<16x108xbf16>, vector<108x512xbf16>, vector<16x512xf32> -> vector<16x512xf32>
    %275 = vector.broadcast %21 : vector<16x1xf32> to vector<16x512xf32>
    %276 = arith.addf %274, %275 : vector<16x512xf32>
    %cst_61 = arith.constant 0.000000e+00 : f32
    %277 = vector.broadcast %cst_61 : f32 to vector<16x512xf32>
    %278 = arith.maximumf %276, %277 : vector<16x512xf32>
    %c0_62 = arith.constant 0 : index
    %c0_63 = arith.constant 0 : index
    %279 = vector.load %arg5[%c0_62, %c0_63] : memref<16x512xf32, #tpu.memory_space<vmem>>, vector<16x512xf32>
    tpu.vector_store %arg5[%c0_62, %c0_63], %278 {strides = array<i32>} : memref<16x512xf32, #tpu.memory_space<vmem>>, vector<16x512xf32>,
    return
  }
  func.func @transform_0(%arg0: i32) -> (i32, i32) {
    %c0_i32 = arith.constant 0 : i32
    %c0_i32_0 = arith.constant 0 : i32
    return %c0_i32, %arg0 : i32, i32
  }
  func.func @transform_1(%arg0: i32) -> (i32, i32) {
    %c0_i32 = arith.constant 0 : i32
    %c0_i32_0 = arith.constant 0 : i32
    %c0_i32_1 = arith.constant 0 : i32
    return %c0_i32, %c0_i32_0 : i32, i32
  }
  func.func @transform_2(%arg0: i32) -> (i32, i32) {
    %c0_i32 = arith.constant 0 : i32
    %c0_i32_0 = arith.constant 0 : i32
    %c0_i32_1 = arith.constant 0 : i32
    return %c0_i32, %c0_i32_0 : i32, i32
  }
  func.func @transform_3(%arg0: i32) -> (i32, i32) {
    %c0_i32 = arith.constant 0 : i32
    %c0_i32_0 = arith.constant 0 : i32
    %c0_i32_1 = arith.constant 0 : i32
    return %c0_i32, %c0_i32_0 : i32, i32
  }
  func.func @transform_4(%arg0: i32) -> (i32, i32) {
    %c0_i32 = arith.constant 0 : i32
    %c0_i32_0 = arith.constant 0 : i32
    return %c0_i32, %arg0 : i32, i32
  }
}

</mosaic_0001>

<llo_original>
// kernel: inception_se_block.1
$region0: #{inception_se_block.1}
  #allocation0 [shape = 'u32[]', space=smem, size = 0x4, offset = 0x4, fixed_abs, tag = 'smem constant byte address 0x4 - core index']
  #allocation1 [shape = 'u32[72,128]{1,0:T(1,128)}', space=vmem, size = 0x9000, scoped, tag = 'internal scratch']
  %s0 = inlined_call_operand.vmem [shape: f32[8,512], index: 0, kind: input, shape index: {}]
  %s1 = inlined_call_operand.vmem [shape: f32[9,512], index: 1, kind: input, shape index: {}]
  %s2 = inlined_call_operand.vmem [shape: f32[44,108], index: 2, kind: input, shape index: {}]
  %s3 = inlined_call_operand.vmem [shape: f32[52,2], index: 3, kind: input, shape index: {}]
  %s4 = inlined_call_operand.vmem [shape: f32[16,512], index: 4, kind: output, shape index: {}]
  %s5 = sld [smem:[#allocation0]]
  $region26: #{inception_se_block.1} parent=0
    _
  %s7 = ssub.s32 1, %s5
  %s8 = scalar_select 0, %s7, %s5
  // Predicated region
  $region2: #{inception_se_block.1} parent=0 // pred_check
    _
  $region3: #{inception_se_block.1} parent=0 // pred_check_branch
    %10 = sbr.rel (0) target = $region5
  $region4: #{inception_se_block.1} parent=0 // pred_region
    _
  $region5: #{inception_se_block.1} parent=0 // pred_fallthru
    _
  // Predicated region
  $region6: #{inception_se_block.1} parent=0 // pred_check
    _
  $region7: #{inception_se_block.1} parent=0 // pred_check_branch
    %12 = sbr.rel (0) target = $region9
  $region8: #{inception_se_block.1} parent=0 // pred_region
    _
  $region9: #{inception_se_block.1} parent=0 // pred_fallthru
    _
  // Predicated region
  $region10: #{inception_se_block.1} parent=0 // pred_check
    _
  $region11: #{inception_se_block.1} parent=0 // pred_check_branch
    %14 = sbr.rel (0) target = $region13
  $region12: #{inception_se_block.1} parent=0 // pred_region
    _
  $region13: #{inception_se_block.1} parent=0 // pred_fallthru
    _
  // Predicated region
  $region14: #{inception_se_block.1} parent=0 // pred_check
    _
  $region15: #{inception_se_block.1} parent=0 // pred_check_branch
    %16 = sbr.rel (0) target = $region17
  $region16: #{inception_se_block.1} parent=0 // pred_region
    _
  $region17: #{inception_se_block.1} parent=0 // pred_fallthru
    _
  %v18 = vld [vmem:[%s0] sm:$0xff]
  %v19 = vld [vmem:[%s0 + $0x8] sm:$0xff]
  %v20 = vld [vmem:[%s0 + $0x10] sm:$0xff]
  %v21 = vld [vmem:[%s0 + $0x18] sm:$0xff]
  %v22 = vld [vmem:[%s1] sm:$0xff]
  %v23 = vld [vmem:[%s1 + $0x8] sm:$0xff]
  %v24 = vld [vmem:[%s1 + $0x10] sm:$0xff]
  %v25 = vld [vmem:[%s1 + $0x18] sm:$0xff]
  %v26 = vld [vmem:[%s1 + $0x20] sm:$0x1]
  %v27 = vld [vmem:[%s1 + $0x28] sm:$0x1]
  %v28 = vld [vmem:[%s1 + $0x30] sm:$0x1]
  %v29 = vld [vmem:[%s1 + $0x38] sm:$0x1]
  %v30 = vld [vmem:[%s2] sm:$0xff]
  %v31 = vld [vmem:[%s2 + $0x8] sm:$0xff]
  %v32 = vld [vmem:[%s2 + $0x10] sm:$0xff]
  %v33 = vld [vmem:[%s2 + $0x18] sm:$0xff]
  %v34 = vld [vmem:[%s2 + $0x20] sm:$0xff]
  %v35 = vld [vmem:[%s2 + $0x28] sm:$0xf]
  %v36 = vld [vmem:[%s3] sm:$0xff]
  %v37 = vld [vmem:[%s3 + $0x8] sm:$0xff]
  %v38 = vld [vmem:[%s3 + $0x10] sm:$0xff]
  %v39 = vld [vmem:[%s3 + $0x18] sm:$0xff]
  %v40 = vld [vmem:[%s3 + $0x20] sm:$0xff]
  %v41 = vld [vmem:[%s3 + $0x28] sm:$0xff]
  %v42 = vld [vmem:[%s3 + $0x30] sm:$0xf]
  %v43 = vpack.c.bf16 %v30, %v30
  %v44 = vpack.c.bf16 %v31, %v30
  %v45 = vpack.c.bf16 %v32, %v32
  %v46 = vpack.c.bf16 %v33, %v33
  %v47 = vpack.c.bf16 %v34, %v33
  %v48 = vpack.c.bf16 %v35, %v35
  %v49 = vpack.c.bf16 %v18, %v18
  %v50 = vpack.c.bf16 %v19, %v19
  %v51 = vpack.c.bf16 %v20, %v20
  %v52 = vpack.c.bf16 %v21, %v21
  %54 = vset.pattern.permute.xlu0 0
  %55 = vperm.xlu0 %54, %v36
  %v56 = vpop.permute.xlu0 %55
  %vm58 = vcmask 64512
  %v60 = vsel %vm58, %v43, 0
  %vm62 = vcmask 1043456
  %v64 = vsel %vm62, %v49, 0
  %v67 = vsel %vm62, %v50, 0
  %v70 = vsel %vm62, %v51, 0
  %v73 = vsel %vm62, %v52, 0
  %75 = vmatpush.bf16.msra.mxu0 0
  %76 = vmatpush.bf16.msra.mxu0 0
  %77 = vmatpush.bf16.msra.mxu0 0
  %78 = vmatpush.bf16.msra.mxu0 0
  %79 = vmatpush.bf16.msra.mxu0 0
  %80 = vmatpush.bf16.msra.mxu0 0
  %81 = vmatpush.bf16.msra.mxu0 0
  %82 = vmatpush.bf16.msra.mxu0 %v64
  %83 = vmatmul.bf16.gmra.mxu0 %v60
  %v84 = vpop.f32.mrf.mxu0
  %v85 = vadd.f32 %v56, %v84
  %v86 = vpop.f32.mrf.mxu0
  %87 = vdwg.mxu0
  %88 = vmatpush.bf16.msra.mxu0 0
  %89 = vmatpush.bf16.msra.mxu0 0
  %90 = vmatpush.bf16.msra.mxu0 0
  %91 = vmatpush.bf16.msra.mxu0 0
  %92 = vmatpush.bf16.msra.mxu0 0
  %93 = vmatpush.bf16.msra.mxu0 0
  %94 = vmatpush.bf16.msra.mxu0 0
  %95 = vmatpush.bf16.msra.mxu0 %v67
  %96 = vmatmul.bf16.gmra.mxu0 %v60
  %v97 = vpop.f32.mrf.mxu0
  %v98 = vadd.f32 %v56, %v97
  %v99 = vpop.f32.mrf.mxu0
  %100 = vdwg.mxu0
  %101 = vmatpush.bf16.msra.mxu0 0
  %102 = vmatpush.bf16.msra.mxu0 0
  %103 = vmatpush.bf16.msra.mxu0 0
  %104 = vmatpush.bf16.msra.mxu0 0
  %105 = vmatpush.bf16.msra.mxu0 0
  %106 = vmatpush.bf16.msra.mxu0 0
  %107 = vmatpush.bf16.msra.mxu0 0
  %108 = vmatpush.bf16.msra.mxu0 %v70
  %109 = vmatmul.bf16.gmra.mxu0 %v60
  %v110 = vpop.f32.mrf.mxu0
  %v111 = vadd.f32 %v56, %v110
  %v112 = vpop.f32.mrf.mxu0
  %113 = vdwg.mxu0
  %114 = vmatpush.bf16.msra.mxu0 0
  %115 = vmatpush.bf16.msra.mxu0 0
  %116 = vmatpush.bf16.msra.mxu0 0
  %117 = vmatpush.bf16.msra.mxu0 0
  %118 = vmatpush.bf16.msra.mxu0 0
  %119 = vmatpush.bf16.msra.mxu0 0
  %120 = vmatpush.bf16.msra.mxu0 0
  %121 = vmatpush.bf16.msra.mxu0 %v73
  %122 = vmatmul.bf16.gmra.mxu0 %v60
  %v123 = vpop.f32.mrf.mxu0
  %v124 = vadd.f32 %v56, %v123
  %v125 = vpop.f32.mrf.mxu0
  %126 = vdwg.mxu0
  %v127 = vmax.f32 %v85, 0.0
  %v128 = vmax.f32 %v98, 0.0
  %v129 = vmax.f32 %v111, 0.0
  %v130 = vmax.f32 %v124, 0.0
  %131 = vrot.lane.b32.xlu0 %v127, 17
  %v132 = vpop.permute.xlu0 %131
  %133 = vrot.lane.b32.xlu0 %v128, 17
  %v134 = vpop.permute.xlu0 %133
  %135 = vrot.lane.b32.xlu0 %v129, 17
  %v136 = vpop.permute.xlu0 %135
  %137 = vrot.lane.b32.xlu0 %v130, 17
  %v138 = vpop.permute.xlu0 %137
  %v139 = vlaneseq
  %v140 = vand.u32 %v139, 127
  %vm141 = vcmp.lt.s32.totalorder %v140, 17
  %v142 = vsel %vm141, %v136, %v138
  %v143 = vsel %vm141, %v134, %v136
  %v144 = vsel %vm141, %v132, %v134
  %v145 = vsel %vm141, %v138, %v132
  %v146 = vperm.slane %v22, 0
  %v147 = vperm.slane %v23, 0
  %v148 = vperm.slane %v24, 0
  %v149 = vperm.slane %v25, 0
  %v150 = vmul.f32 %v145, %v146
  %v151 = vmul.f32 %v144, %v147
  %v152 = vmul.f32 %v143, %v148
  %v153 = vmul.f32 %v142, %v149
  %154 = vrot.lane.b32.xlu0 %v127, 16
  %v155 = vpop.permute.xlu0 %154
  %156 = vrot.lane.b32.xlu0 %v128, 16
  %v157 = vpop.permute.xlu0 %156
  %158 = vrot.lane.b32.xlu0 %v129, 16
  %v159 = vpop.permute.xlu0 %158
  %160 = vrot.lane.b32.xlu0 %v130, 16
  %v161 = vpop.permute.xlu0 %160
  %vm162 = vcmp.lt.s32.totalorder %v140, 16
  %v163 = vsel %vm162, %v159, %v161
  %v164 = vsel %vm162, %v157, %v159
  %v165 = vsel %vm162, %v155, %v157
  %v166 = vsel %vm162, %v161, %v155
  %v167 = vperm.slane %v22, 1
  %v168 = vperm.slane %v23, 1
  %v169 = vperm.slane %v24, 1
  %v170 = vperm.slane %v25, 1
  %v171 = vmul.f32 %v166, %v167
  %v172 = vmul.f32 %v165, %v168
  %v173 = vmul.f32 %v164, %v169
  %v174 = vmul.f32 %v163, %v170
  %175 = vrot.lane.b32.xlu0 %v127, 15
  %v176 = vpop.permute.xlu0 %175
  %177 = vrot.lane.b32.xlu0 %v128, 15
  %v178 = vpop.permute.xlu0 %177
  %179 = vrot.lane.b32.xlu0 %v129, 15
  %v180 = vpop.permute.xlu0 %179
  %181 = vrot.lane.b32.xlu0 %v130, 15
  %v182 = vpop.permute.xlu0 %181
  %vm183 = vcmp.lt.s32.totalorder %v140, 15
  %v184 = vsel %vm183, %v180, %v182
  %v185 = vsel %vm183, %v178, %v180
  %v186 = vsel %vm183, %v176, %v178
  %v187 = vsel %vm183, %v182, %v176
  %v188 = vperm.slane %v22, 2
  %v189 = vperm.slane %v23, 2
  %v190 = vperm.slane %v24, 2
  %v191 = vperm.slane %v25, 2
  %v192 = vmul.f32 %v187, %v188
  %v193 = vmul.f32 %v186, %v189
  %v194 = vmul.f32 %v185, %v190
  %v195 = vmul.f32 %v184, %v191
  %196 = vrot.lane.b32.xlu0 %v127, 1
  %v197 = vpop.permute.xlu0 %196
  %198 = vrot.lane.b32.xlu0 %v128, 1
  %v199 = vpop.permute.xlu0 %198
  %200 = vrot.lane.b32.xlu0 %v129, 1
  %v201 = vpop.permute.xlu0 %200
  %202 = vrot.lane.b32.xlu0 %v130, 1
  %v203 = vpop.permute.xlu0 %202
  %vm204 = vcmp.lt.s32.totalorder %v140, 1
  %v205 = vsel %vm204, %v201, %v203
  %v206 = vsel %vm204, %v199, %v201
  %v207 = vsel %vm204, %v197, %v199
  %v208 = vsel %vm204, %v203, %v197
  %v209 = vperm.slane %v22, 3
  %v210 = vperm.slane %v23, 3
  %v211 = vperm.slane %v24, 3
  %v212 = vperm.slane %v25, 3
  %v213 = vmul.f32 %v208, %v209
  %v214 = vmul.f32 %v207, %v210
  %v215 = vmul.f32 %v206, %v211
  %v216 = vmul.f32 %v205, %v212
  %217 = vrot.lane.b32.xlu0 %v127, 127
  %v218 = vpop.permute.xlu0 %217
  %219 = vrot.lane.b32.xlu0 %v128, 127
  %v220 = vpop.permute.xlu0 %219
  %221 = vrot.lane.b32.xlu0 %v129, 127
  %v222 = vpop.permute.xlu0 %221
  %223 = vrot.lane.b32.xlu0 %v130, 127
  %v224 = vpop.permute.xlu0 %223
  %vm225 = vcmp.lt.s32.totalorder %v140, 127
  %v226 = vsel %vm225, %v222, %v224
  %v227 = vsel %vm225, %v220, %v222
  %v228 = vsel %vm225, %v218, %v220
  %v229 = vsel %vm225, %v224, %v218
  %v230 = vperm.slane %v22, 5
  %v231 = vperm.slane %v23, 5
  %v232 = vperm.slane %v24, 5
  %v233 = vperm.slane %v25, 5
  %v234 = vmul.f32 %v228, %v230
  %v235 = vmul.f32 %v227, %v231
  %v236 = vmul.f32 %v226, %v232
  %v237 = vmul.f32 %v229, %v233
  %238 = vrot.lane.b32.xlu0 %v127, 113
  %v239 = vpop.permute.xlu0 %238
  %240 = vrot.lane.b32.xlu0 %v128, 113
  %v241 = vpop.permute.xlu0 %240
  %242 = vrot.lane.b32.xlu0 %v129, 113
  %v243 = vpop.permute.xlu0 %242
  %244 = vrot.lane.b32.xlu0 %v130, 113
  %v245 = vpop.permute.xlu0 %244
  %vm246 = vcmp.lt.s32.totalorder %v140, 113
  %v247 = vsel %vm246, %v243, %v245
  %v248 = vsel %vm246, %v241, %v243
  %v249 = vsel %vm246, %v239, %v241
  %v250 = vsel %vm246, %v245, %v239
  %v251 = vperm.slane %v22, 6
  %v252 = vperm.slane %v23, 6
  %v253 = vperm.slane %v24, 6
  %v254 = vperm.slane %v25, 6
  %v255 = vmul.f32 %v249, %v251
  %v256 = vmul.f32 %v248, %v252
  %v257 = vmul.f32 %v247, %v253
  %v258 = vmul.f32 %v250, %v254
  %259 = vrot.lane.b32.xlu0 %v127, 112
  %v260 = vpop.permute.xlu0 %259
  %261 = vrot.lane.b32.xlu0 %v128, 112
  %v262 = vpop.permute.xlu0 %261
  %263 = vrot.lane.b32.xlu0 %v129, 112
  %v264 = vpop.permute.xlu0 %263
  %265 = vrot.lane.b32.xlu0 %v130, 112
  %v266 = vpop.permute.xlu0 %265
  %vm267 = vcmp.lt.s32.totalorder %v140, 112
  %v268 = vsel %vm267, %v264, %v266
  %v269 = vsel %vm267, %v262, %v264
  %v270 = vsel %vm267, %v260, %v262
  %v271 = vsel %vm267, %v266, %v260
  %v272 = vperm.slane %v22, 7
  %v273 = vperm.slane %v23, 7
  %v274 = vperm.slane %v24, 7
  %v275 = vperm.slane %v25, 7
  %v276 = vmul.f32 %v270, %v272
  %v277 = vmul.f32 %v269, %v273
  %v278 = vmul.f32 %v268, %v274
  %v279 = vmul.f32 %v271, %v275
  %280 = vrot.lane.b32.xlu0 %v127, 111
  %v281 = vpop.permute.xlu0 %280
  %282 = vrot.lane.b32.xlu0 %v128, 111
  %v283 = vpop.permute.xlu0 %282
  %284 = vrot.lane.b32.xlu0 %v129, 111
  %v285 = vpop.permute.xlu0 %284
  %286 = vrot.lane.b32.xlu0 %v130, 111
  %v287 = vpop.permute.xlu0 %286
  %vm288 = vcmp.lt.s32.totalorder %v140, 111
  %v289 = vsel %vm288, %v285, %v287
  %v290 = vsel %vm288, %v283, %v285
  %v291 = vsel %vm288, %v281, %v283
  %v292 = vsel %vm288, %v287, %v281
  %v293 = vperm.slane %v26, 0
  %v294 = vperm.slane %v27, 0
  %v295 = vperm.slane %v28, 0
  %v296 = vperm.slane %v29, 0
  %v297 = vmul.f32 %v291, %v293
  %v298 = vmul.f32 %v290, %v294
  %v299 = vmul.f32 %v289, %v295
  %v300 = vmul.f32 %v292, %v296
  %v305 = vrot.slane %v171, 4
  %v306 = vrot.slane %v172, 4
  %v307 = vrot.slane %v173, 4
  %v308 = vrot.slane %v174, 4
  %v317 = vrot.slane %v213, 4
  %v318 = vrot.slane %v214, 4
  %v319 = vrot.slane %v215, 4
  %v320 = vrot.slane %v216, 4
  %v329 = vrot.slane %v234, 4
  %v330 = vrot.slane %v235, 4
  %v331 = vrot.slane %v236, 4
  %v332 = vrot.slane %v237, 4
  %v341 = vrot.slane %v276, 4
  %v342 = vrot.slane %v277, 4
  %v343 = vrot.slane %v278, 4
  %v344 = vrot.slane %v279, 4
  %v349 = vsel %vm62, %v150, %v305
  %v350 = vsel %vm62, %v151, %v306
  %v351 = vsel %vm62, %v152, %v307
  %v352 = vsel %vm62, %v153, %v308
  %v353 = vsel %vm62, %v192, %v317
  %v354 = vsel %vm62, %v193, %v318
  %v355 = vsel %vm62, %v194, %v319
  %v356 = vsel %vm62, %v195, %v320
  %v357 = vsel %vm62, %v127, %v329
  %v358 = vsel %vm62, %v128, %v330
  %v359 = vsel %vm62, %v129, %v331
  %v360 = vsel %vm62, %v130, %v332
  %v361 = vsel %vm62, %v255, %v341
  %v362 = vsel %vm62, %v256, %v342
  %v363 = vsel %vm62, %v257, %v343
  %v364 = vsel %vm62, %v258, %v344
  %v365 = vpack.c.bf16 %v353, %v349
  %v366 = vpack.c.bf16 %v354, %v350
  %v367 = vpack.c.bf16 %v355, %v351
  %v368 = vpack.c.bf16 %v356, %v352
  %v369 = vpack.c.bf16 %v361, %v357
  %v370 = vpack.c.bf16 %v362, %v358
  %v371 = vpack.c.bf16 %v363, %v359
  %v372 = vpack.c.bf16 %v364, %v360
  %v373 = vpack.c.bf16 %v297, %v297
  %v374 = vpack.c.bf16 %v298, %v298
  %v375 = vpack.c.bf16 %v299, %v299
  %v376 = vpack.c.bf16 %v300, %v300
  %378 = vset.pattern.permute.xlu0 0
  %379 = vperm.xlu0 %378, %v37
  %v380 = vpop.permute.xlu0 %379
  %v382 = vrot.slane %v44, 2
  %v383 = vrot.slane %v56, 4
  %v384 = vrot.slane %v380, 4
  %v385 = vsel %vm62, %v383, %v384
  %vm388 = vcmask 293888
  %v390 = vsel %vm388, %v382, 0
  %vm392 = vcmask 1041408
  %v394 = vsel %vm392, %v373, 0
  %v397 = vsel %vm392, %v374, 0
  %v400 = vsel %vm392, %v375, 0
  %v403 = vsel %vm392, %v376, 0
  %405 = vmatpush.bf16.msra.mxu0 0
  %406 = vmatpush.bf16.msra.mxu0 0
  %407 = vmatpush.bf16.msra.mxu0 0
  %408 = vmatpush.bf16.msra.mxu0 0
  %409 = vmatpush.bf16.msra.mxu0 0
  %410 = vmatpush.bf16.msra.mxu0 %v394
  %411 = vmatpush.bf16.msra.mxu0 %v369
  %412 = vmatpush.bf16.msra.mxu0 %v365
  %413 = vmatmul.bf16.gmra.mxu0 %v390
  %v414 = vpop.f32.mrf.mxu0
  %v415 = vadd.f32 %v385, %v414
  %v416 = vpop.f32.mrf.mxu0
  %v417 = vadd.f32 %v384, %v416
  %418 = vdwg.mxu0
  %419 = vmatpush.bf16.msra.mxu0 0
  %420 = vmatpush.bf16.msra.mxu0 0
  %421 = vmatpush.bf16.msra.mxu0 0
  %422 = vmatpush.bf16.msra.mxu0 0
  %423 = vmatpush.bf16.msra.mxu0 0
  %424 = vmatpush.bf16.msra.mxu0 %v397
  %425 = vmatpush.bf16.msra.mxu0 %v370
  %426 = vmatpush.bf16.msra.mxu0 %v366
  %427 = vmatmul.bf16.gmra.mxu0 %v390
  %v428 = vpop.f32.mrf.mxu0
  %v429 = vadd.f32 %v385, %v428
  %v430 = vpop.f32.mrf.mxu0
  %v431 = vadd.f32 %v384, %v430
  %432 = vdwg.mxu0
  %433 = vmatpush.bf16.msra.mxu0 0
  %434 = vmatpush.bf16.msra.mxu0 0
  %435 = vmatpush.bf16.msra.mxu0 0
  %436 = vmatpush.bf16.msra.mxu0 0
  %437 = vmatpush.bf16.msra.mxu0 0
  %438 = vmatpush.bf16.msra.mxu0 %v400
  %439 = vmatpush.bf16.msra.mxu0 %v371
  %440 = vmatpush.bf16.msra.mxu0 %v367
  %441 = vmatmul.bf16.gmra.mxu0 %v390
  %v442 = vpop.f32.mrf.mxu0
  %v443 = vadd.f32 %v385, %v442
  %v444 = vpop.f32.mrf.mxu0
  %v445 = vadd.f32 %v384, %v444
  %446 = vdwg.mxu0
  %447 = vmatpush.bf16.msra.mxu0 0
  %448 = vmatpush.bf16.msra.mxu0 0
  %449 = vmatpush.bf16.msra.mxu0 0
  %450 = vmatpush.bf16.msra.mxu0 0
  %451 = vmatpush.bf16.msra.mxu0 0
  %452 = vmatpush.bf16.msra.mxu0 %v403
  %453 = vmatpush.bf16.msra.mxu0 %v372
  %454 = vmatpush.bf16.msra.mxu0 %v368
  %455 = vmatmul.bf16.gmra.mxu0 %v390
  %v456 = vpop.f32.mrf.mxu0
  %v457 = vadd.f32 %v385, %v456
  %v458 = vpop.f32.mrf.mxu0
  %v459 = vadd.f32 %v384, %v458
  %460 = vdwg.mxu0
  %v461 = vmax.f32 %v415, 0.0
  %v462 = vmax.f32 %v429, 0.0
  %v463 = vmax.f32 %v443, 0.0
  %v464 = vmax.f32 %v457, 0.0
  %v465 = vmax.f32 %v417, 0.0
  %v466 = vmax.f32 %v431, 0.0
  %v467 = vmax.f32 %v445, 0.0
  %v468 = vmax.f32 %v459, 0.0
  %469 = vrot.lane.b32.xlu0 %v461, 17
  %v470 = vpop.permute.xlu0 %469
  %471 = vrot.lane.b32.xlu0 %v462, 17
  %v472 = vpop.permute.xlu0 %471
  %473 = vrot.lane.b32.xlu0 %v463, 17
  %v474 = vpop.permute.xlu0 %473
  %475 = vrot.lane.b32.xlu0 %v464, 17
  %v476 = vpop.permute.xlu0 %475
  %v477 = vsel %vm141, %v474, %v476
  %v478 = vsel %vm141, %v472, %v474
  %v479 = vsel %vm141, %v470, %v472
  %v480 = vsel %vm141, %v476, %v470
  %v481 = vmul.f32 %v480, %v146
  %v482 = vmul.f32 %v479, %v147
  %v483 = vmul.f32 %v478, %v148
  %v484 = vmul.f32 %v477, %v149
  %485 = vrot.lane.b32.xlu0 %v461, 16
  %v486 = vpop.permute.xlu0 %485
  %487 = vrot.lane.b32.xlu0 %v462, 16
  %v488 = vpop.permute.xlu0 %487
  %489 = vrot.lane.b32.xlu0 %v463, 16
  %v490 = vpop.permute.xlu0 %489
  %491 = vrot.lane.b32.xlu0 %v464, 16
  %v492 = vpop.permute.xlu0 %491
  %v493 = vsel %vm162, %v490, %v492
  %v494 = vsel %vm162, %v488, %v490
  %v495 = vsel %vm162, %v486, %v488
  %v496 = vsel %vm162, %v492, %v486
  %v497 = vmul.f32 %v496, %v167
  %v498 = vmul.f32 %v495, %v168
  %v499 = vmul.f32 %v494, %v169
  %v500 = vmul.f32 %v493, %v170
  %501 = vrot.lane.b32.xlu0 %v461, 15
  %v502 = vpop.permute.xlu0 %501
  %503 = vrot.lane.b32.xlu0 %v462, 15
  %v504 = vpop.permute.xlu0 %503
  %505 = vrot.lane.b32.xlu0 %v463, 15
  %v506 = vpop.permute.xlu0 %505
  %507 = vrot.lane.b32.xlu0 %v464, 15
  %v508 = vpop.permute.xlu0 %507
  %v509 = vsel %vm183, %v506, %v508
  %v510 = vsel %vm183, %v504, %v506
  %v511 = vsel %vm183, %v502, %v504
  %v512 = vsel %vm183, %v508, %v502
  %v513 = vmul.f32 %v512, %v188
  %v514 = vmul.f32 %v511, %v189
  %v515 = vmul.f32 %v510, %v190
  %v516 = vmul.f32 %v509, %v191
  %517 = vrot.lane.b32.xlu0 %v461, 1
  %v518 = vpop.permute.xlu0 %517
  %519 = vrot.lane.b32.xlu0 %v462, 1
  %v520 = vpop.permute.xlu0 %519
  %521 = vrot.lane.b32.xlu0 %v463, 1
  %v522 = vpop.permute.xlu0 %521
  %523 = vrot.lane.b32.xlu0 %v464, 1
  %v524 = vpop.permute.xlu0 %523
  %v525 = vsel %vm204, %v522, %v524
  %v526 = vsel %vm204, %v520, %v522
  %v527 = vsel %vm204, %v518, %v520
  %v528 = vsel %vm204, %v524, %v518
  %v529 = vmul.f32 %v528, %v209
  %v530 = vmul.f32 %v527, %v210
  %v531 = vmul.f32 %v526, %v211
  %v532 = vmul.f32 %v525, %v212
  %533 = vrot.lane.b32.xlu0 %v461, 127
  %v534 = vpop.permute.xlu0 %533
  %535 = vrot.lane.b32.xlu0 %v462, 127
  %v536 = vpop.permute.xlu0 %535
  %537 = vrot.lane.b32.xlu0 %v463, 127
  %v538 = vpop.permute.xlu0 %537
  %539 = vrot.lane.b32.xlu0 %v464, 127
  %v540 = vpop.permute.xlu0 %539
  %v541 = vsel %vm225, %v538, %v540
  %v542 = vsel %vm225, %v536, %v538
  %v543 = vsel %vm225, %v534, %v536
  %v544 = vsel %vm225, %v540, %v534
  %v545 = vmul.f32 %v543, %v230
  %v546 = vmul.f32 %v542, %v231
  %v547 = vmul.f32 %v541, %v232
  %v548 = vmul.f32 %v544, %v233
  %549 = vrot.lane.b32.xlu0 %v461, 113
  %v550 = vpop.permute.xlu0 %549
  %551 = vrot.lane.b32.xlu0 %v462, 113
  %v552 = vpop.permute.xlu0 %551
  %553 = vrot.lane.b32.xlu0 %v463, 113
  %v554 = vpop.permute.xlu0 %553
  %555 = vrot.lane.b32.xlu0 %v464, 113
  %v556 = vpop.permute.xlu0 %555
  %v557 = vsel %vm246, %v554, %v556
  %v558 = vsel %vm246, %v552, %v554
  %v559 = vsel %vm246, %v550, %v552
  %v560 = vsel %vm246, %v556, %v550
  %v561 = vmul.f32 %v559, %v251
  %v562 = vmul.f32 %v558, %v252
  %v563 = vmul.f32 %v557, %v253
  %v564 = vmul.f32 %v560, %v254
  %565 = vrot.lane.b32.xlu0 %v461, 112
  %v566 = vpop.permute.xlu0 %565
  %567 = vrot.lane.b32.xlu0 %v462, 112
  %v568 = vpop.permute.xlu0 %567
  %569 = vrot.lane.b32.xlu0 %v463, 112
  %v570 = vpop.permute.xlu0 %569
  %571 = vrot.lane.b32.xlu0 %v464, 112
  %v572 = vpop.permute.xlu0 %571
  %v573 = vsel %vm267, %v570, %v572
  %v574 = vsel %vm267, %v568, %v570
  %v575 = vsel %vm267, %v566, %v568
  %v576 = vsel %vm267, %v572, %v566
  %v577 = vmul.f32 %v575, %v272
  %v578 = vmul.f32 %v574, %v273
  %v579 = vmul.f32 %v573, %v274
  %v580 = vmul.f32 %v576, %v275
  %581 = vrot.lane.b32.xlu0 %v461, 111
  %v582 = vpop.permute.xlu0 %581
  %583 = vrot.lane.b32.xlu0 %v462, 111
  %v584 = vpop.permute.xlu0 %583
  %585 = vrot.lane.b32.xlu0 %v463, 111
  %v586 = vpop.permute.xlu0 %585
  %587 = vrot.lane.b32.xlu0 %v464, 111
  %v588 = vpop.permute.xlu0 %587
  %v589 = vsel %vm288, %v586, %v588
  %v590 = vsel %vm288, %v584, %v586
  %v591 = vsel %vm288, %v582, %v584
  %v592 = vsel %vm288, %v588, %v582
  %v593 = vmul.f32 %v591, %v293
  %v594 = vmul.f32 %v590, %v294
  %v595 = vmul.f32 %v589, %v295
  %v596 = vmul.f32 %v592, %v296
  %v601 = vrot.slane %v497, 4
  %v602 = vrot.slane %v498, 4
  %v603 = vrot.slane %v499, 4
  %v604 = vrot.slane %v500, 4
  %v613 = vrot.slane %v529, 4
  %v614 = vrot.slane %v530, 4
  %v615 = vrot.slane %v531, 4
  %v616 = vrot.slane %v532, 4
  %v625 = vrot.slane %v545, 4
  %v626 = vrot.slane %v546, 4
  %v627 = vrot.slane %v547, 4
  %v628 = vrot.slane %v548, 4
  %v637 = vrot.slane %v577, 4
  %v638 = vrot.slane %v578, 4
  %v639 = vrot.slane %v579, 4
  %v640 = vrot.slane %v580, 4
  %v645 = vsel %vm62, %v481, %v601
  %v646 = vsel %vm62, %v482, %v602
  %v647 = vsel %vm62, %v483, %v603
  %v648 = vsel %vm62, %v484, %v604
  %v649 = vsel %vm62, %v513, %v613
  %v650 = vsel %vm62, %v514, %v614
  %v651 = vsel %vm62, %v515, %v615
  %v652 = vsel %vm62, %v516, %v616
  %v653 = vsel %vm62, %v461, %v625
  %v654 = vsel %vm62, %v462, %v626
  %v655 = vsel %vm62, %v463, %v627
  %v656 = vsel %vm62, %v464, %v628
  %v657 = vsel %vm62, %v561, %v637
  %v658 = vsel %vm62, %v562, %v638
  %v659 = vsel %vm62, %v563, %v639
  %v660 = vsel %vm62, %v564, %v640
  %v661 = vpack.c.bf16 %v649, %v645
  %v662 = vpack.c.bf16 %v650, %v646
  %v663 = vpack.c.bf16 %v651, %v647
  %v664 = vpack.c.bf16 %v652, %v648
  %v665 = vpack.c.bf16 %v657, %v653
  %v666 = vpack.c.bf16 %v658, %v654
  %v667 = vpack.c.bf16 %v659, %v655
  %v668 = vpack.c.bf16 %v660, %v656
  %v669 = vpack.c.bf16 %v593, %v593
  %v670 = vpack.c.bf16 %v594, %v594
  %v671 = vpack.c.bf16 %v595, %v595
  %v672 = vpack.c.bf16 %v596, %v596
  %674 = vset.pattern.permute.xlu0 0
  %675 = vperm.xlu0 %674, %v38
  %v676 = vpop.permute.xlu0 %675
  %v679 = vsel %vm388, %v45, 0
  %v682 = vsel %vm392, %v669, 0
  %v685 = vsel %vm392, %v670, 0
  %v688 = vsel %vm392, %v671, 0
  %v691 = vsel %vm392, %v672, 0
  %693 = vmatpush.bf16.msra.mxu0 0
  %694 = vmatpush.bf16.msra.mxu0 0
  %695 = vmatpush.bf16.msra.mxu0 0
  %696 = vmatpush.bf16.msra.mxu0 0
  %697 = vmatpush.bf16.msra.mxu0 0
  %698 = vmatpush.bf16.msra.mxu0 %v682
  %699 = vmatpush.bf16.msra.mxu0 %v665
  %700 = vmatpush.bf16.msra.mxu0 %v661
  %701 = vmatmul.bf16.gmra.mxu0 %v679
  %v702 = vpop.f32.mrf.mxu0
  %v703 = vadd.f32 %v676, %v702
  %v704 = vpop.f32.mrf.mxu0
  %705 = vdwg.mxu0
  %706 = vmatpush.bf16.msra.mxu0 0
  %707 = vmatpush.bf16.msra.mxu0 0
  %708 = vmatpush.bf16.msra.mxu0 0
  %709 = vmatpush.bf16.msra.mxu0 0
  %710 = vmatpush.bf16.msra.mxu0 0
  %711 = vmatpush.bf16.msra.mxu0 %v685
  %712 = vmatpush.bf16.msra.mxu0 %v666
  %713 = vmatpush.bf16.msra.mxu0 %v662
  %714 = vmatmul.bf16.gmra.mxu0 %v679
  %v715 = vpop.f32.mrf.mxu0
  %v716 = vadd.f32 %v676, %v715
  %v717 = vpop.f32.mrf.mxu0
  %718 = vdwg.mxu0
  %719 = vmatpush.bf16.msra.mxu0 0
  %720 = vmatpush.bf16.msra.mxu0 0
  %721 = vmatpush.bf16.msra.mxu0 0
  %722 = vmatpush.bf16.msra.mxu0 0
  %723 = vmatpush.bf16.msra.mxu0 0
  %724 = vmatpush.bf16.msra.mxu0 %v688
  %725 = vmatpush.bf16.msra.mxu0 %v667
  %726 = vmatpush.bf16.msra.mxu0 %v663
  %727 = vmatmul.bf16.gmra.mxu0 %v679
  %v728 = vpop.f32.mrf.mxu0
  %v729 = vadd.f32 %v676, %v728
  %v730 = vpop.f32.mrf.mxu0
  %731 = vdwg.mxu0
  %732 = vmatpush.bf16.msra.mxu0 0
  %733 = vmatpush.bf16.msra.mxu0 0
  %734 = vmatpush.bf16.msra.mxu0 0
  %735 = vmatpush.bf16.msra.mxu0 0
  %736 = vmatpush.bf16.msra.mxu0 0
  %737 = vmatpush.bf16.msra.mxu0 %v691
  %738 = vmatpush.bf16.msra.mxu0 %v668
  %739 = vmatpush.bf16.msra.mxu0 %v664
  %740 = vmatmul.bf16.gmra.mxu0 %v679
  %v741 = vpop.f32.mrf.mxu0
  %v742 = vadd.f32 %v676, %v741
  %v743 = vpop.f32.mrf.mxu0
  %744 = vdwg.mxu0
  %v745 = vmax.f32 %v703, 0.0
  %v746 = vmax.f32 %v716, 0.0
  %v747 = vmax.f32 %v729, 0.0
  %v748 = vmax.f32 %v742, 0.0
  %749 = vrot.lane.b32.xlu0 %v465, 17
  %v750 = vpop.permute.xlu0 %749
  %751 = vrot.lane.b32.xlu0 %v466, 17
  %v752 = vpop.permute.xlu0 %751
  %753 = vrot.lane.b32.xlu0 %v467, 17
  %v754 = vpop.permute.xlu0 %753
  %755 = vrot.lane.b32.xlu0 %v468, 17
  %v756 = vpop.permute.xlu0 %755
  %v757 = vsel %vm141, %v754, %v756
  %v758 = vsel %vm141, %v752, %v754
  %v759 = vsel %vm141, %v750, %v752
  %v760 = vsel %vm141, %v756, %v750
  %v761 = vmul.f32 %v760, %v146
  %v762 = vmul.f32 %v759, %v147
  %v763 = vmul.f32 %v758, %v148
  %v764 = vmul.f32 %v757, %v149
  %765 = vrot.lane.b32.xlu0 %v465, 16
  %v766 = vpop.permute.xlu0 %765
  %767 = vrot.lane.b32.xlu0 %v466, 16
  %v768 = vpop.permute.xlu0 %767
  %769 = vrot.lane.b32.xlu0 %v467, 16
  %v770 = vpop.permute.xlu0 %769
  %771 = vrot.lane.b32.xlu0 %v468, 16
  %v772 = vpop.permute.xlu0 %771
  %v773 = vsel %vm162, %v770, %v772
  %v774 = vsel %vm162, %v768, %v770
  %v775 = vsel %vm162, %v766, %v768
  %v776 = vsel %vm162, %v772, %v766
  %v777 = vmul.f32 %v776, %v167
  %v778 = vmul.f32 %v775, %v168
  %v779 = vmul.f32 %v774, %v169
  %v780 = vmul.f32 %v773, %v170
  %781 = vrot.lane.b32.xlu0 %v465, 15
  %v782 = vpop.permute.xlu0 %781
  %783 = vrot.lane.b32.xlu0 %v466, 15
  %v784 = vpop.permute.xlu0 %783
  %785 = vrot.lane.b32.xlu0 %v467, 15
  %v786 = vpop.permute.xlu0 %785
  %787 = vrot.lane.b32.xlu0 %v468, 15
  %v788 = vpop.permute.xlu0 %787
  %v789 = vsel %vm183, %v786, %v788
  %v790 = vsel %vm183, %v784, %v786
  %v791 = vsel %vm183, %v782, %v784
  %v792 = vsel %vm183, %v788, %v782
  %v793 = vmul.f32 %v792, %v188
  %v794 = vmul.f32 %v791, %v189
  %v795 = vmul.f32 %v790, %v190
  %v796 = vmul.f32 %v789, %v191
  %797 = vrot.lane.b32.xlu0 %v465, 1
  %v798 = vpop.permute.xlu0 %797
  %799 = vrot.lane.b32.xlu0 %v466, 1
  %v800 = vpop.permute.xlu0 %799
  %801 = vrot.lane.b32.xlu0 %v467, 1
  %v802 = vpop.permute.xlu0 %801
  %803 = vrot.lane.b32.xlu0 %v468, 1
  %v804 = vpop.permute.xlu0 %803
  %v805 = vsel %vm204, %v802, %v804
  %v806 = vsel %vm204, %v800, %v802
  %v807 = vsel %vm204, %v798, %v800
  %v808 = vsel %vm204, %v804, %v798
  %v809 = vmul.f32 %v808, %v209
  %v810 = vmul.f32 %v807, %v210
  %v811 = vmul.f32 %v806, %v211
  %v812 = vmul.f32 %v805, %v212
  %813 = vrot.lane.b32.xlu0 %v465, 127
  %v814 = vpop.permute.xlu0 %813
  %815 = vrot.lane.b32.xlu0 %v466, 127
  %v816 = vpop.permute.xlu0 %815
  %817 = vrot.lane.b32.xlu0 %v467, 127
  %v818 = vpop.permute.xlu0 %817
  %819 = vrot.lane.b32.xlu0 %v468, 127
  %v820 = vpop.permute.xlu0 %819
  %v821 = vsel %vm225, %v818, %v820
  %v822 = vsel %vm225, %v816, %v818
  %v823 = vsel %vm225, %v814, %v816
  %v824 = vsel %vm225, %v820, %v814
  %v825 = vmul.f32 %v823, %v230
  %v826 = vmul.f32 %v822, %v231
  %v827 = vmul.f32 %v821, %v232
  %v828 = vmul.f32 %v824, %v233
  %829 = vrot.lane.b32.xlu0 %v465, 113
  %v830 = vpop.permute.xlu0 %829
  %831 = vrot.lane.b32.xlu0 %v466, 113
  %v832 = vpop.permute.xlu0 %831
  %833 = vrot.lane.b32.xlu0 %v467, 113
  %v834 = vpop.permute.xlu0 %833
  %835 = vrot.lane.b32.xlu0 %v468, 113
  %v836 = vpop.permute.xlu0 %835
  %v837 = vsel %vm246, %v834, %v836
  %v838 = vsel %vm246, %v832, %v834
  %v839 = vsel %vm246, %v830, %v832
  %v840 = vsel %vm246, %v836, %v830
  %v841 = vmul.f32 %v839, %v251
  %v842 = vmul.f32 %v838, %v252
  %v843 = vmul.f32 %v837, %v253
  %v844 = vmul.f32 %v840, %v254
  %845 = vrot.lane.b32.xlu0 %v465, 112
  %v846 = vpop.permute.xlu0 %845
  %847 = vrot.lane.b32.xlu0 %v466, 112
  %v848 = vpop.permute.xlu0 %847
  %849 = vrot.lane.b32.xlu0 %v467, 112
  %v850 = vpop.permute.xlu0 %849
  %851 = vrot.lane.b32.xlu0 %v468, 112
  %v852 = vpop.permute.xlu0 %851
  %v853 = vsel %vm267, %v850, %v852
  %v854 = vsel %vm267, %v848, %v850
  %v855 = vsel %vm267, %v846, %v848
  %v856 = vsel %vm267, %v852, %v846
  %v857 = vmul.f32 %v855, %v272
  %v858 = vmul.f32 %v854, %v273
  %v859 = vmul.f32 %v853, %v274
  %v860 = vmul.f32 %v856, %v275
  %861 = vrot.lane.b32.xlu0 %v465, 111
  %v862 = vpop.permute.xlu0 %861
  %863 = vrot.lane.b32.xlu0 %v466, 111
  %v864 = vpop.permute.xlu0 %863
  %865 = vrot.lane.b32.xlu0 %v467, 111
  %v866 = vpop.permute.xlu0 %865
  %867 = vrot.lane.b32.xlu0 %v468, 111
  %v868 = vpop.permute.xlu0 %867
  %v869 = vsel %vm288, %v866, %v868
  %v870 = vsel %vm288, %v864, %v866
  %v871 = vsel %vm288, %v862, %v864
  %v872 = vsel %vm288, %v868, %v862
  %v873 = vmul.f32 %v871, %v293
  %v874 = vmul.f32 %v870, %v294
  %v875 = vmul.f32 %v869, %v295
  %v876 = vmul.f32 %v872, %v296
  %v881 = vrot.slane %v777, 4
  %v882 = vrot.slane %v778, 4
  %v883 = vrot.slane %v779, 4
  %v884 = vrot.slane %v780, 4
  %v893 = vrot.slane %v809, 4
  %v894 = vrot.slane %v810, 4
  %v895 = vrot.slane %v811, 4
  %v896 = vrot.slane %v812, 4
  %v905 = vrot.slane %v825, 4
  %v906 = vrot.slane %v826, 4
  %v907 = vrot.slane %v827, 4
  %v908 = vrot.slane %v828, 4
  %v917 = vrot.slane %v857, 4
  %v918 = vrot.slane %v858, 4
  %v919 = vrot.slane %v859, 4
  %v920 = vrot.slane %v860, 4
  %v925 = vsel %vm62, %v761, %v881
  %v926 = vsel %vm62, %v762, %v882
  %v927 = vsel %vm62, %v763, %v883
  %v928 = vsel %vm62, %v764, %v884
  %v929 = vsel %vm62, %v793, %v893
  %v930 = vsel %vm62, %v794, %v894
  %v931 = vsel %vm62, %v795, %v895
  %v932 = vsel %vm62, %v796, %v896
  %v933 = vsel %vm62, %v465, %v905
  %v934 = vsel %vm62, %v466, %v906
  %v935 = vsel %vm62, %v467, %v907
  %v936 = vsel %vm62, %v468, %v908
  %v937 = vsel %vm62, %v841, %v917
  %v938 = vsel %vm62, %v842, %v918
  %v939 = vsel %vm62, %v843, %v919
  %v940 = vsel %vm62, %v844, %v920
  %v941 = vpack.c.bf16 %v929, %v925
  %v942 = vpack.c.bf16 %v930, %v926
  %v943 = vpack.c.bf16 %v931, %v927
  %v944 = vpack.c.bf16 %v932, %v928
  %v945 = vpack.c.bf16 %v937, %v933
  %v946 = vpack.c.bf16 %v938, %v934
  %v947 = vpack.c.bf16 %v939, %v935
  %v948 = vpack.c.bf16 %v940, %v936
  %v949 = vpack.c.bf16 %v873, %v873
  %v950 = vpack.c.bf16 %v874, %v874
  %v951 = vpack.c.bf16 %v875, %v875
  %v952 = vpack.c.bf16 %v876, %v876
  %v954 = vrot.slane %v45, 2
  %v955 = vrot.slane %v676, 4
  %v958 = vsel %vm388, %v954, 0
  %v961 = vsel %vm392, %v949, 0
  %v964 = vsel %vm392, %v950, 0
  %v967 = vsel %vm392, %v951, 0
  %v970 = vsel %vm392, %v952, 0
  %972 = vmatpush.bf16.msra.mxu0 0
  %973 = vmatpush.bf16.msra.mxu0 0
  %974 = vmatpush.bf16.msra.mxu0 0
  %975 = vmatpush.bf16.msra.mxu0 0
  %976 = vmatpush.bf16.msra.mxu0 0
  %977 = vmatpush.bf16.msra.mxu0 %v961
  %978 = vmatpush.bf16.msra.mxu0 %v945
  %979 = vmatpush.bf16.msra.mxu0 %v941
  %980 = vmatmul.bf16.gmra.mxu0 %v958
  %v981 = vpop.f32.mrf.mxu0
  %v982 = vadd.f32 %v955, %v981
  %v983 = vpop.f32.mrf.mxu0
  %984 = vdwg.mxu0
  %985 = vmatpush.bf16.msra.mxu0 0
  %986 = vmatpush.bf16.msra.mxu0 0
  %987 = vmatpush.bf16.msra.mxu0 0
  %988 = vmatpush.bf16.msra.mxu0 0
  %989 = vmatpush.bf16.msra.mxu0 0
  %990 = vmatpush.bf16.msra.mxu0 %v964
  %991 = vmatpush.bf16.msra.mxu0 %v946
  %992 = vmatpush.bf16.msra.mxu0 %v942
  %993 = vmatmul.bf16.gmra.mxu0 %v958
  %v994 = vpop.f32.mrf.mxu0
  %v995 = vadd.f32 %v955, %v994
  %v996 = vpop.f32.mrf.mxu0
  %997 = vdwg.mxu0
  %998 = vmatpush.bf16.msra.mxu0 0
  %999 = vmatpush.bf16.msra.mxu0 0
  %1000 = vmatpush.bf16.msra.mxu0 0
  %1001 = vmatpush.bf16.msra.mxu0 0
  %1002 = vmatpush.bf16.msra.mxu0 0
  %1003 = vmatpush.bf16.msra.mxu0 %v967
  %1004 = vmatpush.bf16.msra.mxu0 %v947
  %1005 = vmatpush.bf16.msra.mxu0 %v943
  %1006 = vmatmul.bf16.gmra.mxu0 %v958
  %v1007 = vpop.f32.mrf.mxu0
  %v1008 = vadd.f32 %v955, %v1007
  %v1009 = vpop.f32.mrf.mxu0
  %1010 = vdwg.mxu0
  %1011 = vmatpush.bf16.msra.mxu0 0
  %1012 = vmatpush.bf16.msra.mxu0 0
  %1013 = vmatpush.bf16.msra.mxu0 0
  %1014 = vmatpush.bf16.msra.mxu0 0
  %1015 = vmatpush.bf16.msra.mxu0 0
  %1016 = vmatpush.bf16.msra.mxu0 %v970
  %1017 = vmatpush.bf16.msra.mxu0 %v948
  %1018 = vmatpush.bf16.msra.mxu0 %v944
  %1019 = vmatmul.bf16.gmra.mxu0 %v958
  %v1020 = vpop.f32.mrf.mxu0
  %v1021 = vadd.f32 %v955, %v1020
  %v1022 = vpop.f32.mrf.mxu0
  %1023 = vdwg.mxu0
  %v1024 = vmax.f32 %v982, 0.0
  %v1025 = vmax.f32 %v995, 0.0
  %v1026 = vmax.f32 %v1008, 0.0
  %v1027 = vmax.f32 %v1021, 0.0
  %1028 = vrot.lane.b32.xlu0 %v1024, 17
  %v1029 = vpop.permute.xlu0 %1028
  %1030 = vrot.lane.b32.xlu0 %v1025, 17
  %v1031 = vpop.permute.xlu0 %1030
  %1032 = vrot.lane.b32.xlu0 %v1026, 17
  %v1033 = vpop.permute.xlu0 %1032
  %1034 = vrot.lane.b32.xlu0 %v1027, 17
  %v1035 = vpop.permute.xlu0 %1034
  %v1036 = vsel %vm141, %v1033, %v1035
  %v1037 = vsel %vm141, %v1031, %v1033
  %v1038 = vsel %vm141, %v1029, %v1031
  %v1039 = vsel %vm141, %v1035, %v1029
  %v1040 = vmul.f32 %v1039, %v146
  %v1041 = vmul.f32 %v1038, %v147
  %v1042 = vmul.f32 %v1037, %v148
  %v1043 = vmul.f32 %v1036, %v149
  %1044 = vrot.lane.b32.xlu0 %v1024, 16
  %v1045 = vpop.permute.xlu0 %1044
  %1046 = vrot.lane.b32.xlu0 %v1025, 16
  %v1047 = vpop.permute.xlu0 %1046
  %1048 = vrot.lane.b32.xlu0 %v1026, 16
  %v1049 = vpop.permute.xlu0 %1048
  %1050 = vrot.lane.b32.xlu0 %v1027, 16
  %v1051 = vpop.permute.xlu0 %1050
  %v1052 = vsel %vm162, %v1049, %v1051
  %v1053 = vsel %vm162, %v1047, %v1049
  %v1054 = vsel %vm162, %v1045, %v1047
  %v1055 = vsel %vm162, %v1051, %v1045
  %v1056 = vmul.f32 %v1055, %v167
  %v1057 = vmul.f32 %v1054, %v168
  %v1058 = vmul.f32 %v1053, %v169
  %v1059 = vmul.f32 %v1052, %v170
  %1060 = vrot.lane.b32.xlu0 %v1024, 15
  %v1061 = vpop.permute.xlu0 %1060
  %1062 = vrot.lane.b32.xlu0 %v1025, 15
  %v1063 = vpop.permute.xlu0 %1062
  %1064 = vrot.lane.b32.xlu0 %v1026, 15
  %v1065 = vpop.permute.xlu0 %1064
  %1066 = vrot.lane.b32.xlu0 %v1027, 15
  %v1067 = vpop.permute.xlu0 %1066
  %v1068 = vsel %vm183, %v1065, %v1067
  %v1069 = vsel %vm183, %v1063, %v1065
  %v1070 = vsel %vm183, %v1061, %v1063
  %v1071 = vsel %vm183, %v1067, %v1061
  %v1072 = vmul.f32 %v1071, %v188
  %v1073 = vmul.f32 %v1070, %v189
  %v1074 = vmul.f32 %v1069, %v190
  %v1075 = vmul.f32 %v1068, %v191
  %1076 = vrot.lane.b32.xlu0 %v1024, 1
  %v1077 = vpop.permute.xlu0 %1076
  %1078 = vrot.lane.b32.xlu0 %v1025, 1
  %v1079 = vpop.permute.xlu0 %1078
  %1080 = vrot.lane.b32.xlu0 %v1026, 1
  %v1081 = vpop.permute.xlu0 %1080
  %1082 = vrot.lane.b32.xlu0 %v1027, 1
  %v1083 = vpop.permute.xlu0 %1082
  %v1084 = vsel %vm204, %v1081, %v1083
  %v1085 = vsel %vm204, %v1079, %v1081
  %v1086 = vsel %vm204, %v1077, %v1079
  %v1087 = vsel %vm204, %v1083, %v1077
  %v1088 = vmul.f32 %v1087, %v209
  %v1089 = vmul.f32 %v1086, %v210
  %v1090 = vmul.f32 %v1085, %v211
  %v1091 = vmul.f32 %v1084, %v212
  %1092 = vrot.lane.b32.xlu0 %v1024, 127
  %v1093 = vpop.permute.xlu0 %1092
  %1094 = vrot.lane.b32.xlu0 %v1025, 127
  %v1095 = vpop.permute.xlu0 %1094
  %1096 = vrot.lane.b32.xlu0 %v1026, 127
  %v1097 = vpop.permute.xlu0 %1096
  %1098 = vrot.lane.b32.xlu0 %v1027, 127
  %v1099 = vpop.permute.xlu0 %1098
  %v1100 = vsel %vm225, %v1097, %v1099
  %v1101 = vsel %vm225, %v1095, %v1097
  %v1102 = vsel %vm225, %v1093, %v1095
  %v1103 = vsel %vm225, %v1099, %v1093
  %v1104 = vmul.f32 %v1102, %v230
  %v1105 = vmul.f32 %v1101, %v231
  %v1106 = vmul.f32 %v1100, %v232
  %v1107 = vmul.f32 %v1103, %v233
  %1108 = vrot.lane.b32.xlu0 %v1024, 113
  %v1109 = vpop.permute.xlu0 %1108
  %1110 = vrot.lane.b32.xlu0 %v1025, 113
  %v1111 = vpop.permute.xlu0 %1110
  %1112 = vrot.lane.b32.xlu0 %v1026, 113
  %v1113 = vpop.permute.xlu0 %1112
  %1114 = vrot.lane.b32.xlu0 %v1027, 113
  %v1115 = vpop.permute.xlu0 %1114
  %v1116 = vsel %vm246, %v1113, %v1115
  %v1117 = vsel %vm246, %v1111, %v1113
  %v1118 = vsel %vm246, %v1109, %v1111
  %v1119 = vsel %vm246, %v1115, %v1109
  %v1120 = vmul.f32 %v1118, %v251
  %v1121 = vmul.f32 %v1117, %v252
  %v1122 = vmul.f32 %v1116, %v253
  %v1123 = vmul.f32 %v1119, %v254
  %1124 = vrot.lane.b32.xlu0 %v1024, 112
  %v1125 = vpop.permute.xlu0 %1124
  %1126 = vrot.lane.b32.xlu0 %v1025, 112
  %v1127 = vpop.permute.xlu0 %1126
  %1128 = vrot.lane.b32.xlu0 %v1026, 112
  %v1129 = vpop.permute.xlu0 %1128
  %1130 = vrot.lane.b32.xlu0 %v1027, 112
  %v1131 = vpop.permute.xlu0 %1130
  %v1132 = vsel %vm267, %v1129, %v1131
  %v1133 = vsel %vm267, %v1127, %v1129
  %v1134 = vsel %vm267, %v1125, %v1127
  %v1135 = vsel %vm267, %v1131, %v1125
  %v1136 = vmul.f32 %v1134, %v272
  %v1137 = vmul.f32 %v1133, %v273
  %v1138 = vmul.f32 %v1132, %v274
  %v1139 = vmul.f32 %v1135, %v275
  %1140 = vrot.lane.b32.xlu0 %v1024, 111
  %v1141 = vpop.permute.xlu0 %1140
  %1142 = vrot.lane.b32.xlu0 %v1025, 111
  %v1143 = vpop.permute.xlu0 %1142
  %1144 = vrot.lane.b32.xlu0 %v1026, 111
  %v1145 = vpop.permute.xlu0 %1144
  %1146 = vrot.lane.b32.xlu0 %v1027, 111
  %v1147 = vpop.permute.xlu0 %1146
  %v1148 = vsel %vm288, %v1145, %v1147
  %v1149 = vsel %vm288, %v1143, %v1145
  %v1150 = vsel %vm288, %v1141, %v1143
  %v1151 = vsel %vm288, %v1147, %v1141
  %v1152 = vmul.f32 %v1150, %v293
  %v1153 = vmul.f32 %v1149, %v294
  %v1154 = vmul.f32 %v1148, %v295
  %v1155 = vmul.f32 %v1151, %v296
  %v1160 = vrot.slane %v1056, 4
  %v1161 = vrot.slane %v1057, 4
  %v1162 = vrot.slane %v1058, 4
  %v1163 = vrot.slane %v1059, 4
  %v1172 = vrot.slane %v1088, 4
  %v1173 = vrot.slane %v1089, 4
  %v1174 = vrot.slane %v1090, 4
  %v1175 = vrot.slane %v1091, 4
  %v1184 = vrot.slane %v1104, 4
  %v1185 = vrot.slane %v1105, 4
  %v1186 = vrot.slane %v1106, 4
  %v1187 = vrot.slane %v1107, 4
  %v1196 = vrot.slane %v1136, 4
  %v1197 = vrot.slane %v1137, 4
  %v1198 = vrot.slane %v1138, 4
  %v1199 = vrot.slane %v1139, 4
  %v1204 = vsel %vm62, %v1040, %v1160
  %v1205 = vsel %vm62, %v1041, %v1161
  %v1206 = vsel %vm62, %v1042, %v1162
  %v1207 = vsel %vm62, %v1043, %v1163
  %v1208 = vsel %vm62, %v1072, %v1172
  %v1209 = vsel %vm62, %v1073, %v1173
  %v1210 = vsel %vm62, %v1074, %v1174
  %v1211 = vsel %vm62, %v1075, %v1175
  %v1212 = vsel %vm62, %v1024, %v1184
  %v1213 = vsel %vm62, %v1025, %v1185
  %v1214 = vsel %vm62, %v1026, %v1186
  %v1215 = vsel %vm62, %v1027, %v1187
  %v1216 = vsel %vm62, %v1120, %v1196
  %v1217 = vsel %vm62, %v1121, %v1197
  %v1218 = vsel %vm62, %v1122, %v1198
  %v1219 = vsel %vm62, %v1123, %v1199
  %v1220 = vpack.c.bf16 %v1208, %v1204
  %v1221 = vpack.c.bf16 %v1209, %v1205
  %v1222 = vpack.c.bf16 %v1210, %v1206
  %v1223 = vpack.c.bf16 %v1211, %v1207
  %v1224 = vpack.c.bf16 %v1216, %v1212
  %v1225 = vpack.c.bf16 %v1217, %v1213
  %v1226 = vpack.c.bf16 %v1218, %v1214
  %v1227 = vpack.c.bf16 %v1219, %v1215
  %v1228 = vpack.c.bf16 %v1152, %v1152
  %v1229 = vpack.c.bf16 %v1153, %v1153
  %v1230 = vpack.c.bf16 %v1154, %v1154
  %v1231 = vpack.c.bf16 %v1155, %v1155
  %1233 = vset.pattern.permute.xlu0 0
  %1234 = vperm.xlu0 %1233, %v39
  %v1235 = vpop.permute.xlu0 %1234
  %v1238 = vsel %vm388, %v46, 0
  %v1241 = vsel %vm392, %v1228, 0
  %v1244 = vsel %vm392, %v1229, 0
  %v1247 = vsel %vm392, %v1230, 0
  %v1250 = vsel %vm392, %v1231, 0
  %1252 = vmatpush.bf16.msra.mxu0 0
  %1253 = vmatpush.bf16.msra.mxu0 0
  %1254 = vmatpush.bf16.msra.mxu0 0
  %1255 = vmatpush.bf16.msra.mxu0 0
  %1256 = vmatpush.bf16.msra.mxu0 0
  %1257 = vmatpush.bf16.msra.mxu0 %v1241
  %1258 = vmatpush.bf16.msra.mxu0 %v1224
  %1259 = vmatpush.bf16.msra.mxu0 %v1220
  %1260 = vmatmul.bf16.gmra.mxu0 %v1238
  %v1261 = vpop.f32.mrf.mxu0
  %v1262 = vadd.f32 %v1235, %v1261
  %v1263 = vpop.f32.mrf.mxu0
  %1264 = vdwg.mxu0
  %1265 = vmatpush.bf16.msra.mxu0 0
  %1266 = vmatpush.bf16.msra.mxu0 0
  %1267 = vmatpush.bf16.msra.mxu0 0
  %1268 = vmatpush.bf16.msra.mxu0 0
  %1269 = vmatpush.bf16.msra.mxu0 0
  %1270 = vmatpush.bf16.msra.mxu0 %v1244
  %1271 = vmatpush.bf16.msra.mxu0 %v1225
  %1272 = vmatpush.bf16.msra.mxu0 %v1221
  %1273 = vmatmul.bf16.gmra.mxu0 %v1238
  %v1274 = vpop.f32.mrf.mxu0
  %v1275 = vadd.f32 %v1235, %v1274
  %v1276 = vpop.f32.mrf.mxu0
  %1277 = vdwg.mxu0
  %1278 = vmatpush.bf16.msra.mxu0 0
  %1279 = vmatpush.bf16.msra.mxu0 0
  %1280 = vmatpush.bf16.msra.mxu0 0
  %1281 = vmatpush.bf16.msra.mxu0 0
  %1282 = vmatpush.bf16.msra.mxu0 0
  %1283 = vmatpush.bf16.msra.mxu0 %v1247
  %1284 = vmatpush.bf16.msra.mxu0 %v1226
  %1285 = vmatpush.bf16.msra.mxu0 %v1222
  %1286 = vmatmul.bf16.gmra.mxu0 %v1238
  %v1287 = vpop.f32.mrf.mxu0
  %v1288 = vadd.f32 %v1235, %v1287
  %v1289 = vpop.f32.mrf.mxu0
  %1290 = vdwg.mxu0
  %1291 = vmatpush.bf16.msra.mxu0 0
  %1292 = vmatpush.bf16.msra.mxu0 0
  %1293 = vmatpush.bf16.msra.mxu0 0
  %1294 = vmatpush.bf16.msra.mxu0 0
  %1295 = vmatpush.bf16.msra.mxu0 0
  %1296 = vmatpush.bf16.msra.mxu0 %v1250
  %1297 = vmatpush.bf16.msra.mxu0 %v1227
  %1298 = vmatpush.bf16.msra.mxu0 %v1223
  %1299 = vmatmul.bf16.gmra.mxu0 %v1238
  %v1300 = vpop.f32.mrf.mxu0
  %v1301 = vadd.f32 %v1235, %v1300
  %v1302 = vpop.f32.mrf.mxu0
  %1303 = vdwg.mxu0
  %v1304 = vmax.f32 %v1262, 0.0
  %v1305 = vmax.f32 %v1275, 0.0
  %v1306 = vmax.f32 %v1288, 0.0
  %v1307 = vmax.f32 %v1301, 0.0
  %v1308 = vsel %vm62, %v127, 0.0
  %v1309 = vsel %vm62, %v128, 0.0
  %v1310 = vadd.f32 %v1308, %v1309
  %1311 = vadd.xlane.f32.xlu0 %v1310
  %v1312 = vpop.xlane.xlu0 %1311
  %v1313 = vmul.f32 %v1312, 0.00390625
  %v1315 = vrot.slane %v1313, 4
  %v1317 = vmul.f32 %v41, %v1315
  %v1319 = vrot.slane %v1317, 4
  %vm1321 = vcmask 11264
  %v1322 = vsel %vm1321, %v1319, 0.0
  %v1323 = vrot.slane %v1322, 4
  %v1324 = vadd.f32 %v1322, %v1323
  %v1325 = vrot.slane %v1324, 2
  %v1326 = vadd.f32 %v1324, %v1325
  %v1327 = vrot.slane %v1326, 1
  %v1328 = vadd.f32 %v1326, %v1327
  %v1329 = vmax.f32 %v1328, 0.0
  %v1330 = vmul.f32 %v42, %v1329
  %v1331 = vsel %vm1321, %v1330, 0.0
  %1332 = vadd.xlane.f32.xlu0 %v1331
  %v1333 = vpop.xlane.xlu0 %1332
  %v1334 = vxor.u32 %v1333, 2147483648
  %v1335 = vmul.f32 %v1334, 1.442695
  %v1336 = vpow.pop %v1335
  %v1337 = vadd.f32 %v1336, 1.0
  %v1338 = vrcp.pop %v1337
  %v1339 = vmul.f32 %v1337, %v1338
  %v1340 = vsub.f32 1.0, %v1339
  %v1341 = vmul.f32 %v1338, %v1340
  %v1342 = vadd.f32 %v1338, %v1341
  %vm1343 = vweird.f32 %v1337
  %vm1344 = vweird.f32 %v1338
  %vm1345 = vmor %vm1343, %vm1344
  %v1346 = vsel %vm1345, %v1338, %v1342
  %v1347 = vand.u32 2147483647, %v1337
  %vm1348 = vcmp.eq.f32.partialorder %v1347, 8.507059e+37
  %v1349 = vand.u32 %v1337, 2147483648
  %v1350 = vor.u32 1.1754944e-38, %v1349
  %v1351 = vsel %vm1348, %v1350, %v1346
  %v1352 = vmul.f32 1.0, %v1351
  %v1353 = vsel %vm62, %v129, 0.0
  %v1354 = vsel %vm62, %v130, 0.0
  %v1355 = vadd.f32 %v1353, %v1354
  %1356 = vadd.xlane.f32.xlu0 %v1355
  %v1357 = vpop.xlane.xlu0 %1356
  %v1358 = vmul.f32 %v1357, 0.00390625
  %v1360 = vrot.slane %v1358, 4
  %v1362 = vmul.f32 %v41, %v1360
  %v1364 = vrot.slane %v1362, 4
  %v1366 = vsel %vm1321, %v1364, 0.0
  %v1367 = vrot.slane %v1366, 4
  %v1368 = vadd.f32 %v1366, %v1367
  %v1369 = vrot.slane %v1368, 2
  %v1370 = vadd.f32 %v1368, %v1369
  %v1371 = vrot.slane %v1370, 1
  %v1372 = vadd.f32 %v1370, %v1371
  %v1373 = vmax.f32 %v1372, 0.0
  %v1374 = vmul.f32 %v42, %v1373
  %v1375 = vsel %vm1321, %v1374, 0.0
  %1376 = vadd.xlane.f32.xlu0 %v1375
  %v1377 = vpop.xlane.xlu0 %1376
  %v1378 = vxor.u32 %v1377, 2147483648
  %v1379 = vmul.f32 %v1378, 1.442695
  %v1380 = vpow.pop %v1379
  %v1381 = vadd.f32 %v1380, 1.0
  %v1382 = vrcp.pop %v1381
  %v1383 = vmul.f32 %v1381, %v1382
  %v1384 = vsub.f32 1.0, %v1383
  %v1385 = vmul.f32 %v1382, %v1384
  %v1386 = vadd.f32 %v1382, %v1385
  %vm1387 = vweird.f32 %v1381
  %vm1388 = vweird.f32 %v1382
  %vm1389 = vmor %vm1387, %vm1388
  %v1390 = vsel %vm1389, %v1382, %v1386
  %v1391 = vand.u32 2147483647, %v1381
  %vm1392 = vcmp.eq.f32.partialorder %v1391, 8.507059e+37
  %v1393 = vand.u32 %v1381, 2147483648
  %v1394 = vor.u32 1.1754944e-38, %v1393
  %v1395 = vsel %vm1392, %v1394, %v1390
  %v1396 = vmul.f32 1.0, %v1395
  %v1397 = vmul.f32 %v127, %v1352
  %v1398 = vmul.f32 %v128, %v1352
  %v1399 = vmul.f32 %v129, %v1396
  %v1400 = vmul.f32 %v130, %v1396
  %v1401 = vmul.f32 %v745, %v1397
  %v1402 = vmul.f32 %v746, %v1398
  %v1403 = vmul.f32 %v747, %v1399
  %v1404 = vmul.f32 %v748, %v1400
  %v1409 = vrot.slane %v1397, 4
  %v1410 = vrot.slane %v1398, 4
  %v1411 = vrot.slane %v1399, 4
  %v1412 = vrot.slane %v1400, 4
  %v1417 = vmul.f32 %v461, %v1409
  %v1418 = vmul.f32 %v462, %v1410
  %v1419 = vmul.f32 %v463, %v1411
  %v1420 = vmul.f32 %v464, %v1412
  %v1421 = vmul.f32 %v1304, %v1397
  %v1422 = vmul.f32 %v1305, %v1398
  %v1423 = vmul.f32 %v1306, %v1399
  %v1424 = vmul.f32 %v1307, %v1400
  %v1425 = vsel %vm62, %v1401, %v1417
  %v1426 = vsel %vm62, %v1402, %v1418
  %v1427 = vsel %vm62, %v1403, %v1419
  %v1428 = vsel %vm62, %v1404, %v1420
  %1429 = vrot.lane.b32.xlu0 %v1425, 17
  %v1430 = vpop.permute.xlu0 %1429
  %1431 = vrot.lane.b32.xlu0 %v1421, 17
  %v1432 = vpop.permute.xlu0 %1431
  %1433 = vrot.lane.b32.xlu0 %v1426, 17
  %v1434 = vpop.permute.xlu0 %1433
  %1435 = vrot.lane.b32.xlu0 %v1422, 17
  %v1436 = vpop.permute.xlu0 %1435
  %1437 = vrot.lane.b32.xlu0 %v1427, 17
  %v1438 = vpop.permute.xlu0 %1437
  %1439 = vrot.lane.b32.xlu0 %v1423, 17
  %v1440 = vpop.permute.xlu0 %1439
  %1441 = vrot.lane.b32.xlu0 %v1428, 17
  %v1442 = vpop.permute.xlu0 %1441
  %1443 = vrot.lane.b32.xlu0 %v1424, 17
  %v1444 = vpop.permute.xlu0 %1443
  %v1445 = vsel %vm141, %v1438, %v1442
  %v1446 = vsel %vm141, %v1440, %v1444
  %v1447 = vsel %vm141, %v1434, %v1438
  %v1448 = vsel %vm141, %v1436, %v1440
  %v1449 = vsel %vm141, %v1430, %v1434
  %v1450 = vsel %vm141, %v1432, %v1436
  %v1451 = vsel %vm141, %v1442, %v1430
  %v1452 = vsel %vm141, %v1444, %v1432
  %v1453 = vmul.f32 %v1451, %v146
  %v1454 = vmul.f32 %v1449, %v147
  %v1455 = vmul.f32 %v1447, %v148
  %v1456 = vmul.f32 %v1445, %v149
  %v1457 = vmul.f32 %v1452, %v146
  %v1458 = vmul.f32 %v1450, %v147
  %v1459 = vmul.f32 %v1448, %v148
  %v1460 = vmul.f32 %v1446, %v149
  %1461 = vrot.lane.b32.xlu0 %v1425, 16
  %v1462 = vpop.permute.xlu0 %1461
  %1463 = vrot.lane.b32.xlu0 %v1421, 16
  %v1464 = vpop.permute.xlu0 %1463
  %1465 = vrot.lane.b32.xlu0 %v1426, 16
  %v1466 = vpop.permute.xlu0 %1465
  %1467 = vrot.lane.b32.xlu0 %v1422, 16
  %v1468 = vpop.permute.xlu0 %1467
  %1469 = vrot.lane.b32.xlu0 %v1427, 16
  %v1470 = vpop.permute.xlu0 %1469
  %1471 = vrot.lane.b32.xlu0 %v1423, 16
  %v1472 = vpop.permute.xlu0 %1471
  %1473 = vrot.lane.b32.xlu0 %v1428, 16
  %v1474 = vpop.permute.xlu0 %1473
  %1475 = vrot.lane.b32.xlu0 %v1424, 16
  %v1476 = vpop.permute.xlu0 %1475
  %v1477 = vsel %vm162, %v1470, %v1474
  %v1478 = vsel %vm162, %v1472, %v1476
  %v1479 = vsel %vm162, %v1466, %v1470
  %v1480 = vsel %vm162, %v1468, %v1472
  %v1481 = vsel %vm162, %v1462, %v1466
  %v1482 = vsel %vm162, %v1464, %v1468
  %v1483 = vsel %vm162, %v1474, %v1462
  %v1484 = vsel %vm162, %v1476, %v1464
  %v1485 = vmul.f32 %v1483, %v167
  %v1486 = vmul.f32 %v1481, %v168
  %v1487 = vmul.f32 %v1479, %v169
  %v1488 = vmul.f32 %v1477, %v170
  %v1489 = vmul.f32 %v1484, %v167
  %v1490 = vmul.f32 %v1482, %v168
  %v1491 = vmul.f32 %v1480, %v169
  %v1492 = vmul.f32 %v1478, %v170
  %1493 = vrot.lane.b32.xlu0 %v1425, 15
  %v1494 = vpop.permute.xlu0 %1493
  %1495 = vrot.lane.b32.xlu0 %v1421, 15
  %v1496 = vpop.permute.xlu0 %1495
  %1497 = vrot.lane.b32.xlu0 %v1426, 15
  %v1498 = vpop.permute.xlu0 %1497
  %1499 = vrot.lane.b32.xlu0 %v1422, 15
  %v1500 = vpop.permute.xlu0 %1499
  %1501 = vrot.lane.b32.xlu0 %v1427, 15
  %v1502 = vpop.permute.xlu0 %1501
  %1503 = vrot.lane.b32.xlu0 %v1423, 15
  %v1504 = vpop.permute.xlu0 %1503
  %1505 = vrot.lane.b32.xlu0 %v1428, 15
  %v1506 = vpop.permute.xlu0 %1505
  %1507 = vrot.lane.b32.xlu0 %v1424, 15
  %v1508 = vpop.permute.xlu0 %1507
  %v1509 = vsel %vm183, %v1502, %v1506
  %v1510 = vsel %vm183, %v1504, %v1508
  %v1511 = vsel %vm183, %v1498, %v1502
  %v1512 = vsel %vm183, %v1500, %v1504
  %v1513 = vsel %vm183, %v1494, %v1498
  %v1514 = vsel %vm183, %v1496, %v1500
  %v1515 = vsel %vm183, %v1506, %v1494
  %v1516 = vsel %vm183, %v1508, %v1496
  %v1517 = vmul.f32 %v1515, %v188
  %v1518 = vmul.f32 %v1513, %v189
  %v1519 = vmul.f32 %v1511, %v190
  %v1520 = vmul.f32 %v1509, %v191
  %v1521 = vmul.f32 %v1516, %v188
  %v1522 = vmul.f32 %v1514, %v189
  %v1523 = vmul.f32 %v1512, %v190
  %v1524 = vmul.f32 %v1510, %v191
  %1525 = vrot.lane.b32.xlu0 %v1425, 1
  %v1526 = vpop.permute.xlu0 %1525
  %1527 = vrot.lane.b32.xlu0 %v1421, 1
  %v1528 = vpop.permute.xlu0 %1527
  %1529 = vrot.lane.b32.xlu0 %v1426, 1
  %v1530 = vpop.permute.xlu0 %1529
  %1531 = vrot.lane.b32.xlu0 %v1422, 1
  %v1532 = vpop.permute.xlu0 %1531
  %1533 = vrot.lane.b32.xlu0 %v1427, 1
  %v1534 = vpop.permute.xlu0 %1533
  %1535 = vrot.lane.b32.xlu0 %v1423, 1
  %v1536 = vpop.permute.xlu0 %1535
  %1537 = vrot.lane.b32.xlu0 %v1428, 1
  %v1538 = vpop.permute.xlu0 %1537
  %1539 = vrot.lane.b32.xlu0 %v1424, 1
  %v1540 = vpop.permute.xlu0 %1539
  %v1541 = vsel %vm204, %v1534, %v1538
  %v1542 = vsel %vm204, %v1536, %v1540
  %v1543 = vsel %vm204, %v1530, %v1534
  %v1544 = vsel %vm204, %v1532, %v1536
  %v1545 = vsel %vm204, %v1526, %v1530
  %v1546 = vsel %vm204, %v1528, %v1532
  %v1547 = vsel %vm204, %v1538, %v1526
  %v1548 = vsel %vm204, %v1540, %v1528
  %v1549 = vmul.f32 %v1547, %v209
  %v1550 = vmul.f32 %v1545, %v210
  %v1551 = vmul.f32 %v1543, %v211
  %v1552 = vmul.f32 %v1541, %v212
  %v1553 = vmul.f32 %v1548, %v209
  %v1554 = vmul.f32 %v1546, %v210
  %v1555 = vmul.f32 %v1544, %v211
  %v1556 = vmul.f32 %v1542, %v212
  %1557 = vrot.lane.b32.xlu0 %v1425, 127
  %v1558 = vpop.permute.xlu0 %1557
  %1559 = vrot.lane.b32.xlu0 %v1421, 127
  %v1560 = vpop.permute.xlu0 %1559
  %1561 = vrot.lane.b32.xlu0 %v1426, 127
  %v1562 = vpop.permute.xlu0 %1561
  %1563 = vrot.lane.b32.xlu0 %v1422, 127
  %v1564 = vpop.permute.xlu0 %1563
  %1565 = vrot.lane.b32.xlu0 %v1427, 127
  %v1566 = vpop.permute.xlu0 %1565
  %1567 = vrot.lane.b32.xlu0 %v1423, 127
  %v1568 = vpop.permute.xlu0 %1567
  %1569 = vrot.lane.b32.xlu0 %v1428, 127
  %v1570 = vpop.permute.xlu0 %1569
  %1571 = vrot.lane.b32.xlu0 %v1424, 127
  %v1572 = vpop.permute.xlu0 %1571
  %v1573 = vsel %vm225, %v1566, %v1570
  %v1574 = vsel %vm225, %v1568, %v1572
  %v1575 = vsel %vm225, %v1562, %v1566
  %v1576 = vsel %vm225, %v1564, %v1568
  %v1577 = vsel %vm225, %v1558, %v1562
  %v1578 = vsel %vm225, %v1560, %v1564
  %v1579 = vsel %vm225, %v1570, %v1558
  %v1580 = vsel %vm225, %v1572, %v1560
  %v1581 = vmul.f32 %v1577, %v230
  %v1582 = vmul.f32 %v1575, %v231
  %v1583 = vmul.f32 %v1573, %v232
  %v1584 = vmul.f32 %v1579, %v233
  %v1585 = vmul.f32 %v1578, %v230
  %v1586 = vmul.f32 %v1576, %v231
  %v1587 = vmul.f32 %v1574, %v232
  %v1588 = vmul.f32 %v1580, %v233
  %1589 = vrot.lane.b32.xlu0 %v1425, 113
  %v1590 = vpop.permute.xlu0 %1589
  %1591 = vrot.lane.b32.xlu0 %v1421, 113
  %v1592 = vpop.permute.xlu0 %1591
  %1593 = vrot.lane.b32.xlu0 %v1426, 113
  %v1594 = vpop.permute.xlu0 %1593
  %1595 = vrot.lane.b32.xlu0 %v1422, 113
  %v1596 = vpop.permute.xlu0 %1595
  %1597 = vrot.lane.b32.xlu0 %v1427, 113
  %v1598 = vpop.permute.xlu0 %1597
  %1599 = vrot.lane.b32.xlu0 %v1423, 113
  %v1600 = vpop.permute.xlu0 %1599
  %1601 = vrot.lane.b32.xlu0 %v1428, 113
  %v1602 = vpop.permute.xlu0 %1601
  %1603 = vrot.lane.b32.xlu0 %v1424, 113
  %v1604 = vpop.permute.xlu0 %1603
  %v1605 = vsel %vm246, %v1598, %v1602
  %v1606 = vsel %vm246, %v1600, %v1604
  %v1607 = vsel %vm246, %v1594, %v1598
  %v1608 = vsel %vm246, %v1596, %v1600
  %v1609 = vsel %vm246, %v1590, %v1594
  %v1610 = vsel %vm246, %v1592, %v1596
  %v1611 = vsel %vm246, %v1602, %v1590
  %v1612 = vsel %vm246, %v1604, %v1592
  %v1613 = vmul.f32 %v1609, %v251
  %v1614 = vmul.f32 %v1607, %v252
  %v1615 = vmul.f32 %v1605, %v253
  %v1616 = vmul.f32 %v1611, %v254
  %v1617 = vmul.f32 %v1610, %v251
  %v1618 = vmul.f32 %v1608, %v252
  %v1619 = vmul.f32 %v1606, %v253
  %v1620 = vmul.f32 %v1612, %v254
  %1621 = vrot.lane.b32.xlu0 %v1425, 112
  %v1622 = vpop.permute.xlu0 %1621
  %1623 = vrot.lane.b32.xlu0 %v1421, 112
  %v1624 = vpop.permute.xlu0 %1623
  %1625 = vrot.lane.b32.xlu0 %v1426, 112
  %v1626 = vpop.permute.xlu0 %1625
  %1627 = vrot.lane.b32.xlu0 %v1422, 112
  %v1628 = vpop.permute.xlu0 %1627
  %1629 = vrot.lane.b32.xlu0 %v1427, 112
  %v1630 = vpop.permute.xlu0 %1629
  %1631 = vrot.lane.b32.xlu0 %v1423, 112
  %v1632 = vpop.permute.xlu0 %1631
  %1633 = vrot.lane.b32.xlu0 %v1428, 112
  %v1634 = vpop.permute.xlu0 %1633
  %1635 = vrot.lane.b32.xlu0 %v1424, 112
  %v1636 = vpop.permute.xlu0 %1635
  %v1637 = vsel %vm267, %v1630, %v1634
  %v1638 = vsel %vm267, %v1632, %v1636
  %v1639 = vsel %vm267, %v1626, %v1630
  %v1640 = vsel %vm267, %v1628, %v1632
  %v1641 = vsel %vm267, %v1622, %v1626
  %v1642 = vsel %vm267, %v1624, %v1628
  %v1643 = vsel %vm267, %v1634, %v1622
  %v1644 = vsel %vm267, %v1636, %v1624
  %v1645 = vmul.f32 %v1641, %v272
  %v1646 = vmul.f32 %v1639, %v273
  %v1647 = vmul.f32 %v1637, %v274
  %v1648 = vmul.f32 %v1643, %v275
  %v1649 = vmul.f32 %v1642, %v272
  %v1650 = vmul.f32 %v1640, %v273
  %v1651 = vmul.f32 %v1638, %v274
  %v1652 = vmul.f32 %v1644, %v275
  %1653 = vrot.lane.b32.xlu0 %v1425, 111
  %v1654 = vpop.permute.xlu0 %1653
  %1655 = vrot.lane.b32.xlu0 %v1421, 111
  %v1656 = vpop.permute.xlu0 %1655
  %1657 = vrot.lane.b32.xlu0 %v1426, 111
  %v1658 = vpop.permute.xlu0 %1657
  %1659 = vrot.lane.b32.xlu0 %v1422, 111
  %v1660 = vpop.permute.xlu0 %1659
  %1661 = vrot.lane.b32.xlu0 %v1427, 111
  %v1662 = vpop.permute.xlu0 %1661
  %1663 = vrot.lane.b32.xlu0 %v1423, 111
  %v1664 = vpop.permute.xlu0 %1663
  %1665 = vrot.lane.b32.xlu0 %v1428, 111
  %v1666 = vpop.permute.xlu0 %1665
  %1667 = vrot.lane.b32.xlu0 %v1424, 111
  %v1668 = vpop.permute.xlu0 %1667
  %v1669 = vsel %vm288, %v1662, %v1666
  %v1670 = vsel %vm288, %v1664, %v1668
  %v1671 = vsel %vm288, %v1658, %v1662
  %v1672 = vsel %vm288, %v1660, %v1664
  %v1673 = vsel %vm288, %v1654, %v1658
  %v1674 = vsel %vm288, %v1656, %v1660
  %v1675 = vsel %vm288, %v1666, %v1654
  %v1676 = vsel %vm288, %v1668, %v1656
  %v1677 = vmul.f32 %v1673, %v293
  %v1678 = vmul.f32 %v1671, %v294
  %v1679 = vmul.f32 %v1669, %v295
  %v1680 = vmul.f32 %v1675, %v296
  %v1681 = vmul.f32 %v1674, %v293
  %v1682 = vmul.f32 %v1672, %v294
  %v1683 = vmul.f32 %v1670, %v295
  %v1684 = vmul.f32 %v1676, %v296
  %v1693 = vrot.slane %v1485, 4
  %v1694 = vrot.slane %v1486, 4
  %v1695 = vrot.slane %v1487, 4
  %v1696 = vrot.slane %v1488, 4
  %v1697 = vrot.slane %v1489, 4
  %v1698 = vsel %vm62, %v1693, %v1697
  %v1699 = vrot.slane %v1490, 4
  %v1700 = vsel %vm62, %v1694, %v1699
  %v1701 = vrot.slane %v1491, 4
  %v1702 = vsel %vm62, %v1695, %v1701
  %v1703 = vrot.slane %v1492, 4
  %v1704 = vsel %vm62, %v1696, %v1703
  %v1721 = vrot.slane %v1549, 4
  %v1722 = vrot.slane %v1550, 4
  %v1723 = vrot.slane %v1551, 4
  %v1724 = vrot.slane %v1552, 4
  %v1725 = vrot.slane %v1553, 4
  %v1726 = vsel %vm62, %v1721, %v1725
  %v1727 = vrot.slane %v1554, 4
  %v1728 = vsel %vm62, %v1722, %v1727
  %v1729 = vrot.slane %v1555, 4
  %v1730 = vsel %vm62, %v1723, %v1729
  %v1731 = vrot.slane %v1556, 4
  %v1732 = vsel %vm62, %v1724, %v1731
  %v1749 = vrot.slane %v1581, 4
  %v1750 = vrot.slane %v1582, 4
  %v1751 = vrot.slane %v1583, 4
  %v1752 = vrot.slane %v1584, 4
  %v1753 = vrot.slane %v1585, 4
  %v1754 = vsel %vm62, %v1749, %v1753
  %v1755 = vrot.slane %v1586, 4
  %v1756 = vsel %vm62, %v1750, %v1755
  %v1757 = vrot.slane %v1587, 4
  %v1758 = vsel %vm62, %v1751, %v1757
  %v1759 = vrot.slane %v1588, 4
  %v1760 = vsel %vm62, %v1752, %v1759
  %v1777 = vrot.slane %v1645, 4
  %v1778 = vrot.slane %v1646, 4
  %v1779 = vrot.slane %v1647, 4
  %v1780 = vrot.slane %v1648, 4
  %v1781 = vrot.slane %v1649, 4
  %v1782 = vsel %vm62, %v1777, %v1781
  %v1783 = vrot.slane %v1650, 4
  %v1784 = vsel %vm62, %v1778, %v1783
  %v1785 = vrot.slane %v1651, 4
  %v1786 = vsel %vm62, %v1779, %v1785
  %v1787 = vrot.slane %v1652, 4
  %v1788 = vsel %vm62, %v1780, %v1787
  %v1797 = vsel %vm62, %v1457, %v1693
  %v1798 = vsel %vm62, %v1458, %v1694
  %v1799 = vsel %vm62, %v1459, %v1695
  %v1800 = vsel %vm62, %v1460, %v1696
  %v1801 = vsel %vm62, %v1521, %v1721
  %v1802 = vsel %vm62, %v1522, %v1722
  %v1803 = vsel %vm62, %v1523, %v1723
  %v1804 = vsel %vm62, %v1524, %v1724
  %v1805 = vsel %vm62, %v1421, %v1749
  %v1806 = vsel %vm62, %v1422, %v1750
  %v1807 = vsel %vm62, %v1423, %v1751
  %v1808 = vsel %vm62, %v1424, %v1752
  %v1809 = vsel %vm62, %v1617, %v1777
  %v1810 = vsel %vm62, %v1618, %v1778
  %v1811 = vsel %vm62, %v1619, %v1779
  %v1812 = vsel %vm62, %v1620, %v1780
  %v1813 = vpack.c.bf16 %v1797, %v1453
  %v1814 = vpack.c.bf16 %v1798, %v1454
  %v1815 = vpack.c.bf16 %v1799, %v1455
  %v1816 = vpack.c.bf16 %v1800, %v1456
  %v1817 = vpack.c.bf16 %v1517, %v1698
  %v1818 = vpack.c.bf16 %v1518, %v1700
  %v1819 = vpack.c.bf16 %v1519, %v1702
  %v1820 = vpack.c.bf16 %v1520, %v1704
  %v1821 = vpack.c.bf16 %v1726, %v1801
  %v1822 = vpack.c.bf16 %v1728, %v1802
  %v1823 = vpack.c.bf16 %v1730, %v1803
  %v1824 = vpack.c.bf16 %v1732, %v1804
  %v1825 = vpack.c.bf16 %v1805, %v1425
  %v1826 = vpack.c.bf16 %v1806, %v1426
  %v1827 = vpack.c.bf16 %v1807, %v1427
  %v1828 = vpack.c.bf16 %v1808, %v1428
  %v1829 = vpack.c.bf16 %v1613, %v1754
  %v1830 = vpack.c.bf16 %v1614, %v1756
  %v1831 = vpack.c.bf16 %v1615, %v1758
  %v1832 = vpack.c.bf16 %v1616, %v1760
  %v1833 = vpack.c.bf16 %v1782, %v1809
  %v1834 = vpack.c.bf16 %v1784, %v1810
  %v1835 = vpack.c.bf16 %v1786, %v1811
  %v1836 = vpack.c.bf16 %v1788, %v1812
  %v1837 = vpack.c.bf16 %v1681, %v1677
  %v1838 = vpack.c.bf16 %v1682, %v1678
  %v1839 = vpack.c.bf16 %v1683, %v1679
  %v1840 = vpack.c.bf16 %v1684, %v1680
  %1842 = vset.pattern.permute.xlu0 0
  %1843 = vperm.xlu0 %1842, %v40
  %v1844 = vpop.permute.xlu0 %1843
  %1846 = vset.pattern.permute.xlu0 0
  %1847 = vperm.xlu0 %1846, %v41
  %v1848 = vpop.permute.xlu0 %1847
  %vm1851 = vcmask 1045504
  %v1852 = vrot.slane %v47, 2
  %v1853 = vrot.slane %v48, 2
  %v1854 = vsel %vm1851, %v1852, %v1853
  %v1855 = vrot.slane %v1235, 4
  %v1856 = vrot.slane %v1844, 4
  %v1857 = vsel %vm62, %v1855, %v1856
  %v1858 = vrot.slane %v1848, 4
  %v1859 = vsel %vm62, %v1856, %v1858
  %vm1862 = vcmask 883712
  %v1864 = vsel %vm1862, %v1854, 0
  %vm1866 = vcmask 1045504
  %v1868 = vsel %vm1866, %v1837, 0
  %v1871 = vsel %vm1866, %v1838, 0
  %v1874 = vsel %vm1866, %v1839, 0
  %v1877 = vsel %vm1866, %v1840, 0
  %1879 = vmatpush.bf16.msra.mxu0 0
  %1880 = vmatpush.bf16.msra.mxu0 %v1868
  %1881 = vmatpush.bf16.msra.mxu0 %v1833
  %1882 = vmatpush.bf16.msra.mxu0 %v1829
  %1883 = vmatpush.bf16.msra.mxu0 %v1825
  %1884 = vmatpush.bf16.msra.mxu0 %v1821
  %1885 = vmatpush.bf16.msra.mxu0 %v1817
  %1886 = vmatpush.bf16.msra.mxu0 %v1813
  %1887 = vmatmul.bf16.gmra.mxu0 %v1864
  %v1888 = vpop.f32.mrf.mxu0
  %v1889 = vadd.f32 %v1857, %v1888
  %v1890 = vpop.f32.mrf.mxu0
  %v1891 = vadd.f32 %v1859, %v1890
  %1892 = vdwg.mxu0
  %1893 = vmatpush.bf16.msra.mxu0 0
  %1894 = vmatpush.bf16.msra.mxu0 %v1871
  %1895 = vmatpush.bf16.msra.mxu0 %v1834
  %1896 = vmatpush.bf16.msra.mxu0 %v1830
  %1897 = vmatpush.bf16.msra.mxu0 %v1826
  %1898 = vmatpush.bf16.msra.mxu0 %v1822
  %1899 = vmatpush.bf16.msra.mxu0 %v1818
  %1900 = vmatpush.bf16.msra.mxu0 %v1814
  %1901 = vmatmul.bf16.gmra.mxu0 %v1864
  %v1902 = vpop.f32.mrf.mxu0
  %v1903 = vadd.f32 %v1857, %v1902
  %v1904 = vpop.f32.mrf.mxu0
  %v1905 = vadd.f32 %v1859, %v1904
  %1906 = vdwg.mxu0
  %1907 = vmatpush.bf16.msra.mxu0 0
  %1908 = vmatpush.bf16.msra.mxu0 %v1874
  %1909 = vmatpush.bf16.msra.mxu0 %v1835
  %1910 = vmatpush.bf16.msra.mxu0 %v1831
  %1911 = vmatpush.bf16.msra.mxu0 %v1827
  %1912 = vmatpush.bf16.msra.mxu0 %v1823
  %1913 = vmatpush.bf16.msra.mxu0 %v1819
  %1914 = vmatpush.bf16.msra.mxu0 %v1815
  %1915 = vmatmul.bf16.gmra.mxu0 %v1864
  %v1916 = vpop.f32.mrf.mxu0
  %v1917 = vadd.f32 %v1857, %v1916
  %v1918 = vpop.f32.mrf.mxu0
  %v1919 = vadd.f32 %v1859, %v1918
  %1920 = vdwg.mxu0
  %1921 = vmatpush.bf16.msra.mxu0 0
  %1922 = vmatpush.bf16.msra.mxu0 %v1877
  %1923 = vmatpush.bf16.msra.mxu0 %v1836
  %1924 = vmatpush.bf16.msra.mxu0 %v1832
  %1925 = vmatpush.bf16.msra.mxu0 %v1828
  %1926 = vmatpush.bf16.msra.mxu0 %v1824
  %1927 = vmatpush.bf16.msra.mxu0 %v1820
  %1928 = vmatpush.bf16.msra.mxu0 %v1816
  %1929 = vmatmul.bf16.gmra.mxu0 %v1864
  %v1930 = vpop.f32.mrf.mxu0
  %v1931 = vadd.f32 %v1857, %v1930
  %v1932 = vpop.f32.mrf.mxu0
  %v1933 = vadd.f32 %v1859, %v1932
  %1934 = vdwg.mxu0
  %v1935 = vmax.f32 %v1889, 0.0
  %v1936 = vmax.f32 %v1903, 0.0
  %v1937 = vmax.f32 %v1917, 0.0
  %v1938 = vmax.f32 %v1931, 0.0
  %v1939 = vmax.f32 %v1891, 0.0
  %v1940 = vmax.f32 %v1905, 0.0
  %v1941 = vmax.f32 %v1919, 0.0
  %v1942 = vmax.f32 %v1933, 0.0
  %1943 = vst [vmem:[%s4] sm:$0xff] %v1935
  %1944 = vst [vmem:[%s4 + $0x8] sm:$0xff] %v1936
  %1945 = vst [vmem:[%s4 + $0x10] sm:$0xff] %v1937
  %1946 = vst [vmem:[%s4 + $0x18] sm:$0xff] %v1938
  %1947 = vst [vmem:[%s4 + $0x20] sm:$0xff] %v1939
  %1948 = vst [vmem:[%s4 + $0x28] sm:$0xff] %v1940
  %1949 = vst [vmem:[%s4 + $0x30] sm:$0xff] %v1941
  %1950 = vst [vmem:[%s4 + $0x38] sm:$0xff] %v1942
  // Predicated region
  $region18: #{inception_se_block.1} parent=0 // pred_check
    _
  $region19: #{inception_se_block.1} parent=0 // pred_check_branch
    %1952 = sbr.rel (0) target = $region21
  $region20: #{inception_se_block.1} parent=0 // pred_region
    _
  $region21: #{inception_se_block.1} parent=0 // pred_fallthru
    _
  // Predicated region
  $region22: #{inception_se_block.1} parent=0 // pred_check
    _
  $region23: #{inception_se_block.1} parent=0 // pred_check_branch
    %1954 = sbr.rel (0) target = $region25
  $region24: #{inception_se_block.1} parent=0 // pred_region
    _
  $region25: #{inception_se_block.1} parent=0 // pred_fallthru
    _

</llo_original>
